<compile_context>
chip_gen: v5e
topology: v5e:2x2
jax: 0.10.0
libtpu: 0.0.40
codegen_flags: <defaults>
</compile_context>

<pallas_src>
import numpy as np
import jax
import jax.numpy as jnp
from jax.experimental import pallas as pl
from jax.experimental.pallas import tpu as pltpu

WINDOW_SIZE = 11
SIGMA = 1.5
C1 = 0.01 ** 2
C2 = 0.03 ** 2

# Output rows (per batch block, accumulated over stage pairs; values replicated
# across the 128 lanes, read back at lane 0):
#   0: sum((R_i - R_{i+1})^2)      1: sum((L_i - L_{i+1})^2)
#   2: sum((hue_i - hue_{i+1})^2)  3: sum(ssim_map)
#   4: sum(|dL_n/dx|)              5: sum(|dL_n/dy|)      6,7: unused (zero)
_N_ROWS = 8
_LANES = 128


def _gaussian_band_matrix(n, window_size=WINDOW_SIZE, sigma=SIGMA):
    """(n, n) band matrix G with G[o, i] = g[i - o + pad].

    x @ G (resp. G-contraction along the other axis) is exactly a 'same'-size
    zero-padded 1-D Gaussian convolution along that axis (matches
    F.conv2d(..., padding=ws//2) per axis).  G is symmetric.
    """
    pad = window_size // 2
    xs = np.arange(window_size, dtype=np.float64)
    g = np.exp(-((xs - pad) ** 2) / (2.0 * sigma ** 2))
    g = g / g.sum()
    idx = np.arange(n)
    d = idx[None, :] - idx[:, None] + pad
    valid = (d >= 0) & (d < window_size)
    G = np.where(valid, g[np.clip(d, 0, window_size - 1)], 0.0)
    return jnp.asarray(G, dtype=jnp.float32)


def _hue_from_rgb(r, g, b, approx=False):
    """RGB planes in [0, 1] -> hue in [0, 1).  approx=True uses the EUP reciprocal."""
    maxc = jnp.maximum(jnp.maximum(r, g), b)
    minc = jnp.minimum(jnp.minimum(r, g), b)
    delta = maxc - minc
    safe = jnp.where(delta > 0, delta, 1.0)
    inv = pl.reciprocal(safe, approx=True) if approx else 1.0 / safe
    hr = (g - b) * inv
    hr = jnp.where(hr < 0, hr + 6.0, hr)          # mod-6 without float remainder
    hg = (b - r) * inv + 2.0
    hb = (r - g) * inv + 4.0
    h = jnp.where(maxc == r, hr, jnp.where(maxc == g, hg, hb))
    return jnp.where(delta > 0, h, 0.0) * (1.0 / 6.0)


# ---------------------------------------------------------------- Pallas kernel

def _restore_loss_kernel(r_ref, l_ref, gh_ref, gw_ref, out_ref,
                         prev_r, prev_l, prev_hue, prev_mu, prev_bsq):
    i = pl.program_id(1)                  # stage index (arbitrary / carried axis)
    n_stages = pl.num_programs(1)

    r = r_ref[0, 0]                       # (C, H, W) f32  == R_i[b]
    l = l_ref[0, 0]                       # (H, W)    f32  == L_i[b] (ch. squeezed)
    gh = gh_ref[...]                      # (H, H) bf16 Gaussian band matrix
    gw = gw_ref[...]                      # (W, W) bf16 Gaussian band matrix
    C, H, W = r.shape
    M = 3 * C                             # stacked planes: R, R^2, R_{i-1}*R_i

    @pl.when(i == 0)
    def _init():
        out_ref[0] = jnp.zeros((_N_ROWS, _LANES), jnp.float32)
        prev_r[...] = r                   # make the cross-blur slice well defined

    hue_cur = _hue_from_rgb(r[0], r[1], r[2], approx=True)            # (H, W)

    # ---- fused separable Gaussian blur of [R, R^2, R_{i-1}*R_i]: one MXU pass.
    r_bf = r.astype(jnp.bfloat16)                                     # cast once
    cross_bf = (prev_r[...] * r).astype(jnp.bfloat16)                 # = R^2 at i==0 (unused)
    x = jnp.concatenate([r_bf, r_bf * r_bf, cross_bf], axis=0)        # (3C, H, W) bf16

    # blur along W: (3C*H, W) @ (W, W)  — filter stays stationary in the MXU.
    y = jnp.dot(x.reshape(M * H, W), gw, preferred_element_type=jnp.float32)
    y3 = y.reshape(M, H, W)
    # transpose each plane (2-D XLU transposes), keep transposed (.., W, H) layout.
    yt = jnp.stack([y3[m].T for m in range(M)], axis=0)               # (3C, W, H) f32
    # blur along H: (3C*W, H) @ (H, H)  (gh symmetric, so no filter transpose).
    z = jnp.dot(yt.astype(jnp.bfloat16).reshape(M * W, H), gh,
                preferred_element_type=jnp.float32)
    z = z.reshape(M, W, H)                                            # transposed layout

    mu2 = z[:C]                          # blur(R_i)
    bsq2 = z[C:2 * C]                    # blur(R_i^2)
    bcross = z[2 * C:]                   # blur(R_{i-1} * R_i)

    row = jax.lax.broadcasted_iota(jnp.int32, (_N_ROWS, _LANES), 0)

    # ---- pair (i-1, i): MSE / hue / SSIM partial sums --------------------------
    @pl.when(i > 0)
    def _pair():
        sum_sq_r = jnp.sum((prev_r[...] - r) ** 2)
        sum_sq_l = jnp.sum((prev_l[...] - l) ** 2)
        sum_sq_h = jnp.sum((prev_hue[...] - hue_cur) ** 2)

        mu1 = prev_mu[...]
        s1 = prev_bsq[...] - mu1 * mu1
        s2 = bsq2 - mu2 * mu2
        s12 = bcross - mu1 * mu2
        num = (2.0 * mu1 * mu2 + C1) * (2.0 * s12 + C2)
        den = (mu1 * mu1 + mu2 * mu2 + C1) * (s1 + s2 + C2)
        ssim_sum = jnp.sum(num * pl.reciprocal(den, approx=True))

        contrib = (jnp.where(row == 0, sum_sq_r, 0.0)
                   + jnp.where(row == 1, sum_sq_l, 0.0)
                   + jnp.where(row == 2, sum_sq_h, 0.0)
                   + jnp.where(row == 3, ssim_sum, 0.0))
        out_ref[0] = out_ref[0] + contrib

    # ---- gradient terms: only the last stage's L is consumed -------------------
    @pl.when(i == n_stages - 1)
    def _grad():
        gx = jnp.sum(jnp.abs(l[:, 1:] - l[:, :-1]))
        gy = jnp.sum(jnp.abs(l[1:, :] - l[:-1, :]))
        contrib = jnp.where(row == 4, gx, 0.0) + jnp.where(row == 5, gy, 0.0)
        out_ref[0] = out_ref[0] + contrib

    # ---- carry this stage's data + blur stats to the next grid step ------------
    @pl.when(i < n_stages - 1)
    def _carry():
        prev_r[...] = r
        prev_l[...] = l
        prev_hue[...] = hue_cur
        prev_mu[...] = mu2
        prev_bsq[...] = bsq2


def _vmem_capacity_bytes(default_bytes=64 << 20):
    try:
        info = pltpu.get_tpu_info()
        cap = getattr(info, "vmem_capacity_bytes", None)
        if cap:
            return int(cap)
    except Exception:
        pass
    return default_bytes


def restore_loss_forward(R_list, L_list, I=None):
    # NOTE: `I` is accepted but unused, matching the PyTorch forward().
    n = len(R_list)
    assert n >= 2
    Rs = jnp.stack(R_list).astype(jnp.float32)                        # (n, B, 3, H, W)
    Ls = jnp.stack([l[:, 0] for l in L_list]).astype(jnp.float32)     # (n, B, H, W)
    _, B, C, H, W = Rs.shape
    assert C == 3
    n_pairs = n - 1
    gh = _gaussian_band_matrix(H).astype(jnp.bfloat16)
    gw = _gaussian_band_matrix(W).astype(jnp.bfloat16)

    # Per-core / per-batch-block VMEM budget: double-buffered I/O + carry + temps.
    img_b = C * H * W * 4
    plane_b = H * W * 4
    filt_b = (H * H + W * W) * 2
    out_b = _N_ROWS * _LANES * 4
    need = (2 * (img_b + plane_b + filt_b + out_b)       # pipelined inputs/output
            + 3 * img_b + 2 * plane_b                    # carry scratch
            + 20 * img_b)                                # stacked blur + SSIM temps
    vmem_cap = int(0.8 * _vmem_capacity_bytes())         # ~100 MiB (128 MiB parts), ~51 MiB (v7x)
    vmem_limit = int(min(max(need, 16 << 20), vmem_cap))

    out = pl.pallas_call(
        _restore_loss_kernel,
        out_shape=jax.ShapeDtypeStruct((B, _N_ROWS, _LANES), jnp.float32),
        grid=(B, n),                                     # (parallel batch, sequential stage)
        in_specs=[
            pl.BlockSpec((1, 1, C, H, W), lambda b, i: (i, b, 0, 0, 0)),   # R_i[b]
            pl.BlockSpec((1, 1, H, W), lambda b, i: (i, b, 0, 0)),         # L_i[b]
            pl.BlockSpec((H, H), lambda b, i: (0, 0)),                     # Gaussian (H)
            pl.BlockSpec((W, W), lambda b, i: (0, 0)),                     # Gaussian (W)
        ],
        out_specs=pl.BlockSpec((1, _N_ROWS, _LANES), lambda b, i: (b, 0, 0)),
        scratch_shapes=[
            pltpu.VMEM((C, H, W), jnp.float32),   # prev R
            pltpu.VMEM((H, W), jnp.float32),      # prev L
            pltpu.VMEM((H, W), jnp.float32),      # prev hue
            pltpu.VMEM((C, W, H), jnp.float32),   # prev blur(R)   (transposed layout)
            pltpu.VMEM((C, W, H), jnp.float32),   # prev blur(R^2) (transposed layout)
        ],
        compiler_params=pltpu.CompilerParams(
            dimension_semantics=("parallel", "arbitrary"),
            vmem_limit_bytes=vmem_limit,
        ),
    )(Rs, Ls, gh, gw)

    sums = jnp.sum(out[:, :, 0], axis=0)          # (8,) summed over batch blocks
    mse_R = sums[0] / (B * C * H * W)
    mse_L = sums[1] / (B * H * W)
    h_loss = 0.5 * sums[2] / (B * H * W)
    ssim_term = 0.2 * (n_pairs - sums[3] / (B * C * H * W))
    loss_l2 = mse_R + mse_L + h_loss + ssim_term

    loss_l = sums[4] / (B * H * (W - 1)) + sums[5] / (B * (H - 1) * W)
    return loss_l2 + 0.2 * loss_l


# ---------------------------------------------------------------- JAX reference

def _gauss_blur_ref(x, gh, gw):
    y = jnp.einsum('bij,jw->biw', x, gw, preferred_element_type=jnp.float32)
    z = jnp.einsum('hi,biw->bhw', gh, y, preferred_element_type=jnp.float32)
    return z


def _ssim_mean_ref(a, b, gh, gw):
    mu1 = _gauss_blur_ref(a, gh, gw)
    mu2 = _gauss_blur_ref(b, gh, gw)
    mu1_sq, mu2_sq, mu1_mu2 = mu1 * mu1, mu2 * mu2, mu1 * mu2
    s1 = _gauss_blur_ref(a * a, gh, gw) - mu1_sq
    s2 = _gauss_blur_ref(b * b, gh, gw) - mu2_sq
    s12 = _gauss_blur_ref(a * b, gh, gw) - mu1_mu2
    num = (2.0 * mu1_mu2 + C1) * (2.0 * s12 + C2)
    den = (mu1_sq + mu2_sq + C1) * (s1 + s2 + C2)
    return jnp.mean(num / den)


def reference_loss(R_list, L_list, I=None):
    """Pure-JAX f32 reference (same math, no Pallas)."""
    n = len(R_list)
    B, C, H, W = R_list[0].shape
    gh = _gaussian_band_matrix(H)
    gw = _gaussian_band_matrix(W)
    loss_l2 = 0.0
    for i in range(n - 1):
        a, b = R_list[i], R_list[i + 1]
        la, lb = L_list[i], L_list[i + 1]
        mse_R = jnp.mean((a - b) ** 2)
        mse_L = jnp.mean((la - lb) ** 2)
        hue_a = _hue_from_rgb(a[:, 0], a[:, 1], a[:, 2])
        hue_b = _hue_from_rgb(b[:, 0], b[:, 1], b[:, 2])
        h = 0.5 * jnp.mean((hue_a - hue_b) ** 2)
        ssim = _ssim_mean_ref(a.reshape(B * C, H, W), b.reshape(B * C, H, W), gh, gw)
        loss_l2 = loss_l2 + mse_R + mse_L + h + 0.2 * (1.0 - ssim)
    Ln = L_list[n - 1][:, 0]
    gx = jnp.mean(jnp.abs(Ln[:, :, 1:] - Ln[:, :, :-1]))
    gy = jnp.mean(jnp.abs(Ln[:, 1:, :] - Ln[:, :-1, :]))
    return loss_l2 + 0.2 * (gx + gy)


if __name__ == "__main__":
    key = jax.random.PRNGKey(0)
    B, H, W = 2, 16, 16
    n = 3  # number of restoration stages
    ks = jax.random.split(key, 2 * n + 1)
    R_list = [jax.random.uniform(ks[i], (B, 3, H, W), jnp.float32) for i in range(n)]
    L_list = [jax.random.uniform(ks[n + i], (B, 1, H, W), jnp.float32) for i in range(n)]
    I = jax.random.uniform(ks[-1], (B, 3, H, W), jnp.float32)  # unused by forward

    loss = restore_loss_forward(R_list, L_list, I)
    jax.block_until_ready(loss)

    ref = reference_loss(R_list, L_list, I)
    np.testing.assert_allclose(np.asarray(loss), np.asarray(ref), rtol=5e-2, atol=5e-2)
    print("KERNEL_OK")
</pallas_src>

<mosaic_0001>
module attributes {stable_mosaic.version = 11 : i64} {
  func.func @_restore_loss_kernel(%arg0: i32, %arg1: i32, %arg2: memref<1x1x3x16x16xf32, #tpu.memory_space<vmem>>, %arg3: memref<1x1x16x16xf32, #tpu.memory_space<vmem>>, %arg4: memref<16x16xbf16, #tpu.memory_space<vmem>>, %arg5: memref<16x16xbf16, #tpu.memory_space<vmem>>, %arg6: memref<1x8x128xf32, #tpu.memory_space<vmem>>, %arg7: memref<3x16x16xf32, #tpu.memory_space<vmem>>, %arg8: memref<16x16xf32, #tpu.memory_space<vmem>>, %arg9: memref<16x16xf32, #tpu.memory_space<vmem>>, %arg10: memref<3x16x16xf32, #tpu.memory_space<vmem>>, %arg11: memref<3x16x16xf32, #tpu.memory_space<vmem>>) attributes {dimension_semantics = [#tpu.dimension_semantics<parallel>, #tpu.dimension_semantics<arbitrary>], iteration_bounds = array<i64: 2, 3>, scalar_prefetch = 0 : i64, scratch_operands = 5 : i64, tpu.core_type = #tpu.core_type<tc>, window_params = [{transform_indices = @transform_0, window_bounds = array<i64: 1, 1, 3, 16, 16>}, {transform_indices = @transform_1, window_bounds = array<i64: 1, 1, 16, 16>}, {pipeline_mode = #tpu.pipeline_mode<synchronous>, transform_indices = @transform_2, window_bounds = array<i64: 16, 16>}, {pipeline_mode = #tpu.pipeline_mode<synchronous>, transform_indices = @transform_3, window_bounds = array<i64: 16, 16>}, {transform_indices = @transform_4, window_bounds = array<i64: 1, 8, 128>}]} {
    %c0 = arith.constant 0 : index
    %c0_0 = arith.constant 0 : index
    %c0_1 = arith.constant 0 : index
    %c0_2 = arith.constant 0 : index
    %c0_3 = arith.constant 0 : index
    %0 = vector.load %arg2[%c0, %c0_0, %c0_1, %c0_2, %c0_3] : memref<1x1x3x16x16xf32, #tpu.memory_space<vmem>>, vector<1x1x3x16x16xf32>
    %1 = vector.shape_cast %0 : vector<1x1x3x16x16xf32> to vector<3x16x16xf32>
    %c0_4 = arith.constant 0 : index
    %c0_5 = arith.constant 0 : index
    %c0_6 = arith.constant 0 : index
    %c0_7 = arith.constant 0 : index
    %2 = vector.load %arg3[%c0_4, %c0_5, %c0_6, %c0_7] : memref<1x1x16x16xf32, #tpu.memory_space<vmem>>, vector<1x1x16x16xf32>
    %3 = vector.shape_cast %2 : vector<1x1x16x16xf32> to vector<16x16xf32>
    %c0_8 = arith.constant 0 : index
    %c0_9 = arith.constant 0 : index
    %4 = vector.load %arg4[%c0_8, %c0_9] : memref<16x16xbf16, #tpu.memory_space<vmem>>, vector<16x16xbf16>
    %c0_10 = arith.constant 0 : index
    %c0_11 = arith.constant 0 : index
    %5 = vector.load %arg5[%c0_10, %c0_11] : memref<16x16xbf16, #tpu.memory_space<vmem>>, vector<16x16xbf16>
    %c0_i32 = arith.constant 0 : i32
    %6 = arith.cmpi eq, %arg1, %c0_i32 : i32
    %7 = arith.extui %6 : i1 to i32
    %c0_i32_12 = arith.constant 0 : i32
    %8 = arith.cmpi ne, %7, %c0_i32_12 : i32
    scf.if %8 {
      %cst_31 = arith.constant 0.000000e+00 : f32
      %113 = vector.broadcast %cst_31 : f32 to vector<8x128xf32>
      %c0_32 = arith.constant 0 : index
      %c0_33 = arith.constant 0 : index
      %c0_34 = arith.constant 0 : index
      %114 = vector.load %arg6[%c0_32, %c0_33, %c0_34] : memref<1x8x128xf32, #tpu.memory_space<vmem>>, vector<1x8x128xf32>
      %115 = vector.shape_cast %114 : vector<1x8x128xf32> to vector<8x128xf32>
      %116 = vector.shape_cast %113 : vector<8x128xf32> to vector<1x8x128xf32>
      tpu.vector_store %arg6[%c0_32, %c0_33, %c0_34], %116 {strides = array<i32>} : memref<1x8x128xf32, #tpu.memory_space<vmem>>, vector<1x8x128xf32>,
      %c0_35 = arith.constant 0 : index
      %c0_36 = arith.constant 0 : index
      %c0_37 = arith.constant 0 : index
      %117 = vector.load %arg7[%c0_35, %c0_36, %c0_37] : memref<3x16x16xf32, #tpu.memory_space<vmem>>, vector<3x16x16xf32>
      tpu.vector_store %arg7[%c0_35, %c0_36, %c0_37], %1 {strides = array<i32>} : memref<3x16x16xf32, #tpu.memory_space<vmem>>, vector<3x16x16xf32>,
    } else {
    }
    %9 = vector.extract_strided_slice %1 {offsets = [0, 0, 0], sizes = [1, 16, 16], strides = [1, 1, 1]} : vector<3x16x16xf32> to vector<1x16x16xf32>
    %10 = vector.shape_cast %9 : vector<1x16x16xf32> to vector<16x16xf32>
    %11 = vector.extract_strided_slice %1 {offsets = [1, 0, 0], sizes = [1, 16, 16], strides = [1, 1, 1]} : vector<3x16x16xf32> to vector<1x16x16xf32>
    %12 = vector.shape_cast %11 : vector<1x16x16xf32> to vector<16x16xf32>
    %13 = vector.extract_strided_slice %1 {offsets = [2, 0, 0], sizes = [1, 16, 16], strides = [1, 1, 1]} : vector<3x16x16xf32> to vector<1x16x16xf32>
    %14 = vector.shape_cast %13 : vector<1x16x16xf32> to vector<16x16xf32>
    %15 = arith.maximumf %10, %12 : vector<16x16xf32>
    %16 = arith.maximumf %15, %14 : vector<16x16xf32>
    %17 = arith.minimumf %10, %12 : vector<16x16xf32>
    %18 = arith.minimumf %17, %14 : vector<16x16xf32>
    %19 = arith.subf %16, %18 : vector<16x16xf32>
    %cst = arith.constant 0.000000e+00 : f32
    %20 = vector.broadcast %cst : f32 to vector<16x16xf32>
    %21 = arith.cmpf ogt, %19, %20 : vector<16x16xf32>
    %cst_13 = arith.constant 1.000000e+00 : f32
    %22 = vector.broadcast %cst_13 : f32 to vector<16x16xf32>
    %23 = arith.select %21, %19, %22 : vector<16x16xi1>, vector<16x16xf32>
    %24 = tpu.reciprocal %23 {approx = true} : vector<16x16xf32> -> vector<16x16xf32>
    %25 = arith.subf %12, %14 : vector<16x16xf32>
    %26 = arith.mulf %25, %24 : vector<16x16xf32>
    %cst_14 = arith.constant 0.000000e+00 : f32
    %27 = vector.broadcast %cst_14 : f32 to vector<16x16xf32>
    %28 = arith.cmpf olt, %26, %27 : vector<16x16xf32>
    %cst_15 = arith.constant 6.000000e+00 : f32
    %29 = vector.broadcast %cst_15 : f32 to vector<16x16xf32>
    %30 = arith.addf %26, %29 : vector<16x16xf32>
    %31 = arith.select %28, %30, %26 : vector<16x16xi1>, vector<16x16xf32>
    %32 = arith.subf %14, %10 : vector<16x16xf32>
    %33 = arith.mulf %32, %24 : vector<16x16xf32>
    %cst_16 = arith.constant 2.000000e+00 : f32
    %34 = vector.broadcast %cst_16 : f32 to vector<16x16xf32>
    %35 = arith.addf %33, %34 : vector<16x16xf32>
    %36 = arith.subf %10, %12 : vector<16x16xf32>
    %37 = arith.mulf %36, %24 : vector<16x16xf32>
    %cst_17 = arith.constant 4.000000e+00 : f32
    %38 = vector.broadcast %cst_17 : f32 to vector<16x16xf32>
    %39 = arith.addf %37, %38 : vector<16x16xf32>
    %40 = arith.cmpf oeq, %16, %10 : vector<16x16xf32>
    %41 = arith.cmpf oeq, %16, %12 : vector<16x16xf32>
    %42 = arith.select %41, %35, %39 : vector<16x16xi1>, vector<16x16xf32>
    %43 = arith.select %40, %31, %42 : vector<16x16xi1>, vector<16x16xf32>
    %cst_18 = arith.constant 0.000000e+00 : f32
    %44 = vector.broadcast %cst_18 : f32 to vector<16x16xf32>
    %45 = arith.cmpf ogt, %19, %44 : vector<16x16xf32>
    %cst_19 = arith.constant 0.000000e+00 : f32
    %46 = vector.broadcast %cst_19 : f32 to vector<16x16xf32>
    %47 = arith.select %45, %43, %46 : vector<16x16xi1>, vector<16x16xf32>
    %cst_20 = arith.constant 0.166666672 : f32
    %48 = vector.broadcast %cst_20 : f32 to vector<16x16xf32>
    %49 = arith.mulf %47, %48 : vector<16x16xf32>
    %50 = arith.truncf %1 : vector<3x16x16xf32> to vector<3x16x16xbf16>
    %c0_21 = arith.constant 0 : index
    %c0_22 = arith.constant 0 : index
    %c0_23 = arith.constant 0 : index
    %51 = vector.load %arg7[%c0_21, %c0_22, %c0_23] : memref<3x16x16xf32, #tpu.memory_space<vmem>>, vector<3x16x16xf32>
    %52 = arith.mulf %51, %1 : vector<3x16x16xf32>
    %53 = arith.truncf %52 : vector<3x16x16xf32> to vector<3x16x16xbf16>
    %54 = arith.mulf %50, %50 : vector<3x16x16xbf16>
    %55 = tpu.concatenate %50, %54, %53 in 0 : vector<3x16x16xbf16>, vector<3x16x16xbf16>, vector<3x16x16xbf16> -> vector<9x16x16xbf16>
    %56 = vector.shape_cast %55 : vector<9x16x16xbf16> to vector<144x16xbf16>
    %cst_24 = arith.constant dense<0.000000e+00> : vector<144x16xf32>
    %57 = tpu.matmul %56, %5, %cst_24 {dimension_numbers = #tpu.dot_dimension_numbers<[1], [0], [0], [1], [0, 0, 1, 1], [], []>} : vector<144x16xbf16>, vector<16x16xbf16>, vector<144x16xf32> -> vector<144x16xf32>
    %58 = vector.shape_cast %57 : vector<144x16xf32> to vector<9x16x16xf32>
    %59 = vector.extract_strided_slice %58 {offsets = [0, 0, 0], sizes = [1, 16, 16], strides = [1, 1, 1]} : vector<9x16x16xf32> to vector<1x16x16xf32>
    %60 = vector.shape_cast %59 : vector<1x16x16xf32> to vector<16x16xf32>
    %61 = tpu.transpose %60, [1, 0] : vector<16x16xf32> -> vector<16x16xf32>
    %62 = vector.extract_strided_slice %58 {offsets = [1, 0, 0], sizes = [1, 16, 16], strides = [1, 1, 1]} : vector<9x16x16xf32> to vector<1x16x16xf32>
    %63 = vector.shape_cast %62 : vector<1x16x16xf32> to vector<16x16xf32>
    %64 = tpu.transpose %63, [1, 0] : vector<16x16xf32> -> vector<16x16xf32>
    %65 = vector.extract_strided_slice %58 {offsets = [2, 0, 0], sizes = [1, 16, 16], strides = [1, 1, 1]} : vector<9x16x16xf32> to vector<1x16x16xf32>
    %66 = vector.shape_cast %65 : vector<1x16x16xf32> to vector<16x16xf32>
    %67 = tpu.transpose %66, [1, 0] : vector<16x16xf32> -> vector<16x16xf32>
    %68 = vector.extract_strided_slice %58 {offsets = [3, 0, 0], sizes = [1, 16, 16], strides = [1, 1, 1]} : vector<9x16x16xf32> to vector<1x16x16xf32>
    %69 = vector.shape_cast %68 : vector<1x16x16xf32> to vector<16x16xf32>
    %70 = tpu.transpose %69, [1, 0] : vector<16x16xf32> -> vector<16x16xf32>
    %71 = vector.extract_strided_slice %58 {offsets = [4, 0, 0], sizes = [1, 16, 16], strides = [1, 1, 1]} : vector<9x16x16xf32> to vector<1x16x16xf32>
    %72 = vector.shape_cast %71 : vector<1x16x16xf32> to vector<16x16xf32>
    %73 = tpu.transpose %72, [1, 0] : vector<16x16xf32> -> vector<16x16xf32>
    %74 = vector.extract_strided_slice %58 {offsets = [5, 0, 0], sizes = [1, 16, 16], strides = [1, 1, 1]} : vector<9x16x16xf32> to vector<1x16x16xf32>
    %75 = vector.shape_cast %74 : vector<1x16x16xf32> to vector<16x16xf32>
    %76 = tpu.transpose %75, [1, 0] : vector<16x16xf32> -> vector<16x16xf32>
    %77 = vector.extract_strided_slice %58 {offsets = [6, 0, 0], sizes = [1, 16, 16], strides = [1, 1, 1]} : vector<9x16x16xf32> to vector<1x16x16xf32>
    %78 = vector.shape_cast %77 : vector<1x16x16xf32> to vector<16x16xf32>
    %79 = tpu.transpose %78, [1, 0] : vector<16x16xf32> -> vector<16x16xf32>
    %80 = vector.extract_strided_slice %58 {offsets = [7, 0, 0], sizes = [1, 16, 16], strides = [1, 1, 1]} : vector<9x16x16xf32> to vector<1x16x16xf32>
    %81 = vector.shape_cast %80 : vector<1x16x16xf32> to vector<16x16xf32>
    %82 = tpu.transpose %81, [1, 0] : vector<16x16xf32> -> vector<16x16xf32>
    %83 = vector.extract_strided_slice %58 {offsets = [8, 0, 0], sizes = [1, 16, 16], strides = [1, 1, 1]} : vector<9x16x16xf32> to vector<1x16x16xf32>
    %84 = vector.shape_cast %83 : vector<1x16x16xf32> to vector<16x16xf32>
    %85 = tpu.transpose %84, [1, 0] : vector<16x16xf32> -> vector<16x16xf32>
    %86 = vector.shape_cast %61 : vector<16x16xf32> to vector<1x16x16xf32>
    %87 = vector.shape_cast %64 : vector<16x16xf32> to vector<1x16x16xf32>
    %88 = vector.shape_cast %67 : vector<16x16xf32> to vector<1x16x16xf32>
    %89 = vector.shape_cast %70 : vector<16x16xf32> to vector<1x16x16xf32>
    %90 = vector.shape_cast %73 : vector<16x16xf32> to vector<1x16x16xf32>
    %91 = vector.shape_cast %76 : vector<16x16xf32> to vector<1x16x16xf32>
    %92 = vector.shape_cast %79 : vector<16x16xf32> to vector<1x16x16xf32>
    %93 = vector.shape_cast %82 : vector<16x16xf32> to vector<1x16x16xf32>
    %94 = vector.shape_cast %85 : vector<16x16xf32> to vector<1x16x16xf32>
    %95 = tpu.concatenate %86, %87, %88, %89, %90, %91, %92, %93, %94 in 0 : vector<1x16x16xf32>, vector<1x16x16xf32>, vector<1x16x16xf32>, vector<1x16x16xf32>, vector<1x16x16xf32>, vector<1x16x16xf32>, vector<1x16x16xf32>, vector<1x16x16xf32>, vector<1x16x16xf32> -> vector<9x16x16xf32>
    %96 = arith.truncf %95 : vector<9x16x16xf32> to vector<9x16x16xbf16>
    %97 = vector.shape_cast %96 : vector<9x16x16xbf16> to vector<144x16xbf16>
    %cst_25 = arith.constant dense<0.000000e+00> : vector<144x16xf32>
    %98 = tpu.matmul %97, %4, %cst_25 {dimension_numbers = #tpu.dot_dimension_numbers<[1], [0], [0], [1], [0, 0, 1, 1], [], []>} : vector<144x16xbf16>, vector<16x16xbf16>, vector<144x16xf32> -> vector<144x16xf32>
    %99 = vector.shape_cast %98 : vector<144x16xf32> to vector<9x16x16xf32>
    %100 = vector.extract_strided_slice %99 {offsets = [0, 0, 0], sizes = [3, 16, 16], strides = [1, 1, 1]} : vector<9x16x16xf32> to vector<3x16x16xf32>
    %101 = vector.extract_strided_slice %99 {offsets = [3, 0, 0], sizes = [3, 16, 16], strides = [1, 1, 1]} : vector<9x16x16xf32> to vector<3x16x16xf32>
    %102 = vector.extract_strided_slice %99 {offsets = [6, 0, 0], sizes = [3, 16, 16], strides = [1, 1, 1]} : vector<9x16x16xf32> to vector<3x16x16xf32>
    %103 = tpu.iota {dimensions = array<i32: 0>} : vector<8x128xi32>
    %c0_i32_26 = arith.constant 0 : i32
    %104 = arith.cmpi sgt, %arg1, %c0_i32_26 : i32
    %105 = arith.extui %104 : i1 to i32
    %c0_i32_27 = arith.constant 0 : i32
    %106 = arith.cmpi ne, %105, %c0_i32_27 : i32
    scf.if %106 {
      %c0_31 = arith.constant 0 : index
      %c0_32 = arith.constant 0 : index
      %c0_33 = arith.constant 0 : index
      %113 = vector.load %arg7[%c0_31, %c0_32, %c0_33] : memref<3x16x16xf32, #tpu.memory_space<vmem>>, vector<3x16x16xf32>
      %114 = arith.subf %113, %1 : vector<3x16x16xf32>
      %115 = arith.mulf %114, %114 : vector<3x16x16xf32>
      %116 = vector.shape_cast %115 : vector<3x16x16xf32> to vector<1x3x16x16xf32>
      %cst_34 = arith.constant dense<0.000000e+00> : vector<1xf32>
      %117 = vector.multi_reduction <add>, %116, %cst_34 [1, 2, 3] : vector<1x3x16x16xf32> to vector<1xf32>
      %118 = vector.shape_cast %117 : vector<1xf32> to vector<1x1x1x1xf32>
      %119 = vector.extract %118[0, 0, 0, 0] : f32 from vector<1x1x1x1xf32>
      %c0_35 = arith.constant 0 : index
      %c0_36 = arith.constant 0 : index
      %120 = vector.load %arg8[%c0_35, %c0_36] : memref<16x16xf32, #tpu.memory_space<vmem>>, vector<16x16xf32>
      %121 = arith.subf %120, %3 : vector<16x16xf32>
      %122 = arith.mulf %121, %121 : vector<16x16xf32>
      %123 = vector.shape_cast %122 : vector<16x16xf32> to vector<1x16x16xf32>
      %cst_37 = arith.constant dense<0.000000e+00> : vector<1xf32>
      %124 = vector.multi_reduction <add>, %123, %cst_37 [1, 2] : vector<1x16x16xf32> to vector<1xf32>
      %125 = vector.shape_cast %124 : vector<1xf32> to vector<1x1x1xf32>
      %126 = vector.extract %125[0, 0, 0] : f32 from vector<1x1x1xf32>
      %c0_38 = arith.constant 0 : index
      %c0_39 = arith.constant 0 : index
      %127 = vector.load %arg9[%c0_38, %c0_39] : memref<16x16xf32, #tpu.memory_space<vmem>>, vector<16x16xf32>
      %128 = arith.subf %127, %49 : vector<16x16xf32>
      %129 = arith.mulf %128, %128 : vector<16x16xf32>
      %130 = vector.shape_cast %129 : vector<16x16xf32> to vector<1x16x16xf32>
      %cst_40 = arith.constant dense<0.000000e+00> : vector<1xf32>
      %131 = vector.multi_reduction <add>, %130, %cst_40 [1, 2] : vector<1x16x16xf32> to vector<1xf32>
      %132 = vector.shape_cast %131 : vector<1xf32> to vector<1x1x1xf32>
      %133 = vector.extract %132[0, 0, 0] : f32 from vector<1x1x1xf32>
      %c0_41 = arith.constant 0 : index
      %c0_42 = arith.constant 0 : index
      %c0_43 = arith.constant 0 : index
      %134 = vector.load %arg10[%c0_41, %c0_42, %c0_43] : memref<3x16x16xf32, #tpu.memory_space<vmem>>, vector<3x16x16xf32>
      %c0_44 = arith.constant 0 : index
      %c0_45 = arith.constant 0 : index
      %c0_46 = arith.constant 0 : index
      %135 = vector.load %arg11[%c0_44, %c0_45, %c0_46] : memref<3x16x16xf32, #tpu.memory_space<vmem>>, vector<3x16x16xf32>
      %136 = arith.mulf %134, %134 : vector<3x16x16xf32>
      %137 = arith.subf %135, %136 : vector<3x16x16xf32>
      %138 = arith.mulf %100, %100 : vector<3x16x16xf32>
      %139 = arith.subf %101, %138 : vector<3x16x16xf32>
      %140 = arith.mulf %134, %100 : vector<3x16x16xf32>
      %141 = arith.subf %102, %140 : vector<3x16x16xf32>
      %cst_47 = arith.constant 2.000000e+00 : f32
      %142 = vector.broadcast %cst_47 : f32 to vector<3x16x16xf32>
      %143 = arith.mulf %142, %134 : vector<3x16x16xf32>
      %144 = arith.mulf %143, %100 : vector<3x16x16xf32>
      %cst_48 = arith.constant 9.99999974E-5 : f32
      %145 = vector.broadcast %cst_48 : f32 to vector<3x16x16xf32>
      %146 = arith.addf %144, %145 : vector<3x16x16xf32>
      %cst_49 = arith.constant 2.000000e+00 : f32
      %147 = vector.broadcast %cst_49 : f32 to vector<3x16x16xf32>
      %148 = arith.mulf %147, %141 : vector<3x16x16xf32>
      %cst_50 = arith.constant 8.99999984E-4 : f32
      %149 = vector.broadcast %cst_50 : f32 to vector<3x16x16xf32>
      %150 = arith.addf %148, %149 : vector<3x16x16xf32>
      %151 = arith.mulf %146, %150 : vector<3x16x16xf32>
      %152 = arith.mulf %134, %134 : vector<3x16x16xf32>
      %153 = arith.mulf %100, %100 : vector<3x16x16xf32>
      %154 = arith.addf %152, %153 : vector<3x16x16xf32>
      %cst_51 = arith.constant 9.99999974E-5 : f32
      %155 = vector.broadcast %cst_51 : f32 to vector<3x16x16xf32>
      %156 = arith.addf %154, %155 : vector<3x16x16xf32>
      %157 = arith.addf %137, %139 : vector<3x16x16xf32>
      %cst_52 = arith.constant 8.99999984E-4 : f32
      %158 = vector.broadcast %cst_52 : f32 to vector<3x16x16xf32>
      %159 = arith.addf %157, %158 : vector<3x16x16xf32>
      %160 = arith.mulf %156, %159 : vector<3x16x16xf32>
      %161 = tpu.reciprocal %160 {approx = true} : vector<3x16x16xf32> -> vector<3x16x16xf32>
      %162 = arith.mulf %151, %161 : vector<3x16x16xf32>
      %163 = vector.shape_cast %162 : vector<3x16x16xf32> to vector<1x3x16x16xf32>
      %cst_53 = arith.constant dense<0.000000e+00> : vector<1xf32>
      %164 = vector.multi_reduction <add>, %163, %cst_53 [1, 2, 3] : vector<1x3x16x16xf32> to vector<1xf32>
      %165 = vector.shape_cast %164 : vector<1xf32> to vector<1x1x1x1xf32>
      %166 = vector.extract %165[0, 0, 0, 0] : f32 from vector<1x1x1x1xf32>
      %c0_i32_54 = arith.constant 0 : i32
      %167 = vector.broadcast %c0_i32_54 : i32 to vector<8x128xi32>
      %168 = arith.cmpi eq, %103, %167 : vector<8x128xi32>
      %cst_55 = arith.constant 0.000000e+00 : f32
      %169 = vector.broadcast %119 : f32 to vector<8x128xf32>
      %170 = vector.broadcast %cst_55 : f32 to vector<8x128xf32>
      %171 = arith.select %168, %169, %170 : vector<8x128xi1>, vector<8x128xf32>
      %c1_i32 = arith.constant 1 : i32
      %172 = vector.broadcast %c1_i32 : i32 to vector<8x128xi32>
      %173 = arith.cmpi eq, %103, %172 : vector<8x128xi32>
      %cst_56 = arith.constant 0.000000e+00 : f32
      %174 = vector.broadcast %126 : f32 to vector<8x128xf32>
      %175 = vector.broadcast %cst_56 : f32 to vector<8x128xf32>
      %176 = arith.select %173, %174, %175 : vector<8x128xi1>, vector<8x128xf32>
      %177 = arith.addf %171, %176 : vector<8x128xf32>
      %c2_i32_57 = arith.constant 2 : i32
      %178 = vector.broadcast %c2_i32_57 : i32 to vector<8x128xi32>
      %179 = arith.cmpi eq, %103, %178 : vector<8x128xi32>
      %cst_58 = arith.constant 0.000000e+00 : f32
      %180 = vector.broadcast %133 : f32 to vector<8x128xf32>
      %181 = vector.broadcast %cst_58 : f32 to vector<8x128xf32>
      %182 = arith.select %179, %180, %181 : vector<8x128xi1>, vector<8x128xf32>
      %183 = arith.addf %177, %182 : vector<8x128xf32>
      %c3_i32 = arith.constant 3 : i32
      %184 = vector.broadcast %c3_i32 : i32 to vector<8x128xi32>
      %185 = arith.cmpi eq, %103, %184 : vector<8x128xi32>
      %cst_59 = arith.constant 0.000000e+00 : f32
      %186 = vector.broadcast %166 : f32 to vector<8x128xf32>
      %187 = vector.broadcast %cst_59 : f32 to vector<8x128xf32>
      %188 = arith.select %185, %186, %187 : vector<8x128xi1>, vector<8x128xf32>
      %189 = arith.addf %183, %188 : vector<8x128xf32>
      %c0_60 = arith.constant 0 : index
      %c0_61 = arith.constant 0 : index
      %c0_62 = arith.constant 0 : index
      %190 = vector.load %arg6[%c0_60, %c0_61, %c0_62] : memref<1x8x128xf32, #tpu.memory_space<vmem>>, vector<1x8x128xf32>
      %191 = vector.shape_cast %190 : vector<1x8x128xf32> to vector<8x128xf32>
      %192 = arith.addf %191, %189 : vector<8x128xf32>
      %c0_63 = arith.constant 0 : index
      %c0_64 = arith.constant 0 : index
      %c0_65 = arith.constant 0 : index
      %193 = vector.load %arg6[%c0_63, %c0_64, %c0_65] : memref<1x8x128xf32, #tpu.memory_space<vmem>>, vector<1x8x128xf32>
      %194 = vector.shape_cast %193 : vector<1x8x128xf32> to vector<8x128xf32>
      %195 = vector.shape_cast %192 : vector<8x128xf32> to vector<1x8x128xf32>
      tpu.vector_store %arg6[%c0_63, %c0_64, %c0_65], %195 {strides = array<i32>} : memref<1x8x128xf32, #tpu.memory_space<vmem>>, vector<1x8x128xf32>,
    } else {
    }
    %c2_i32 = arith.constant 2 : i32
    %107 = arith.cmpi eq, %arg1, %c2_i32 : i32
    %108 = arith.extui %107 : i1 to i32
    %c0_i32_28 = arith.constant 0 : i32
    %109 = arith.cmpi ne, %108, %c0_i32_28 : i32
    scf.if %109 {
      %113 = vector.extract_strided_slice %3 {offsets = [0, 1], sizes = [16, 15], strides = [1, 1]} : vector<16x16xf32> to vector<16x15xf32>
      %114 = vector.extract_strided_slice %3 {offsets = [0, 0], sizes = [16, 15], strides = [1, 1]} : vector<16x16xf32> to vector<16x15xf32>
      %115 = arith.subf %113, %114 : vector<16x15xf32>
      %116 = math.absf %115 : vector<16x15xf32>
      %117 = vector.shape_cast %116 : vector<16x15xf32> to vector<1x16x15xf32>
      %cst_31 = arith.constant dense<0.000000e+00> : vector<1xf32>
      %118 = vector.multi_reduction <add>, %117, %cst_31 [1, 2] : vector<1x16x15xf32> to vector<1xf32>
      %119 = vector.shape_cast %118 : vector<1xf32> to vector<1x1x1xf32>
      %120 = vector.extract %119[0, 0, 0] : f32 from vector<1x1x1xf32>
      %121 = vector.extract_strided_slice %3 {offsets = [1, 0], sizes = [15, 16], strides = [1, 1]} : vector<16x16xf32> to vector<15x16xf32>
      %122 = vector.extract_strided_slice %3 {offsets = [0, 0], sizes = [15, 16], strides = [1, 1]} : vector<16x16xf32> to vector<15x16xf32>
      %123 = arith.subf %121, %122 : vector<15x16xf32>
      %124 = math.absf %123 : vector<15x16xf32>
      %125 = vector.shape_cast %124 : vector<15x16xf32> to vector<1x15x16xf32>
      %cst_32 = arith.constant dense<0.000000e+00> : vector<1xf32>
      %126 = vector.multi_reduction <add>, %125, %cst_32 [1, 2] : vector<1x15x16xf32> to vector<1xf32>
      %127 = vector.shape_cast %126 : vector<1xf32> to vector<1x1x1xf32>
      %128 = vector.extract %127[0, 0, 0] : f32 from vector<1x1x1xf32>
      %c4_i32 = arith.constant 4 : i32
      %129 = vector.broadcast %c4_i32 : i32 to vector<8x128xi32>
      %130 = arith.cmpi eq, %103, %129 : vector<8x128xi32>
      %cst_33 = arith.constant 0.000000e+00 : f32
      %131 = vector.broadcast %120 : f32 to vector<8x128xf32>
      %132 = vector.broadcast %cst_33 : f32 to vector<8x128xf32>
      %133 = arith.select %130, %131, %132 : vector<8x128xi1>, vector<8x128xf32>
      %c5_i32 = arith.constant 5 : i32
      %134 = vector.broadcast %c5_i32 : i32 to vector<8x128xi32>
      %135 = arith.cmpi eq, %103, %134 : vector<8x128xi32>
      %cst_34 = arith.constant 0.000000e+00 : f32
      %136 = vector.broadcast %128 : f32 to vector<8x128xf32>
      %137 = vector.broadcast %cst_34 : f32 to vector<8x128xf32>
      %138 = arith.select %135, %136, %137 : vector<8x128xi1>, vector<8x128xf32>
      %139 = arith.addf %133, %138 : vector<8x128xf32>
      %c0_35 = arith.constant 0 : index
      %c0_36 = arith.constant 0 : index
      %c0_37 = arith.constant 0 : index
      %140 = vector.load %arg6[%c0_35, %c0_36, %c0_37] : memref<1x8x128xf32, #tpu.memory_space<vmem>>, vector<1x8x128xf32>
      %141 = vector.shape_cast %140 : vector<1x8x128xf32> to vector<8x128xf32>
      %142 = arith.addf %141, %139 : vector<8x128xf32>
      %c0_38 = arith.constant 0 : index
      %c0_39 = arith.constant 0 : index
      %c0_40 = arith.constant 0 : index
      %143 = vector.load %arg6[%c0_38, %c0_39, %c0_40] : memref<1x8x128xf32, #tpu.memory_space<vmem>>, vector<1x8x128xf32>
      %144 = vector.shape_cast %143 : vector<1x8x128xf32> to vector<8x128xf32>
      %145 = vector.shape_cast %142 : vector<8x128xf32> to vector<1x8x128xf32>
      tpu.vector_store %arg6[%c0_38, %c0_39, %c0_40], %145 {strides = array<i32>} : memref<1x8x128xf32, #tpu.memory_space<vmem>>, vector<1x8x128xf32>,
    } else {
    }
    %c2_i32_29 = arith.constant 2 : i32
    %110 = arith.cmpi slt, %arg1, %c2_i32_29 : i32
    %111 = arith.extui %110 : i1 to i32
    %c0_i32_30 = arith.constant 0 : i32
    %112 = arith.cmpi ne, %111, %c0_i32_30 : i32
    scf.if %112 {
      %c0_31 = arith.constant 0 : index
      %c0_32 = arith.constant 0 : index
      %c0_33 = arith.constant 0 : index
      %113 = vector.load %arg7[%c0_31, %c0_32, %c0_33] : memref<3x16x16xf32, #tpu.memory_space<vmem>>, vector<3x16x16xf32>
      tpu.vector_store %arg7[%c0_31, %c0_32, %c0_33], %1 {strides = array<i32>} : memref<3x16x16xf32, #tpu.memory_space<vmem>>, vector<3x16x16xf32>,
      %c0_34 = arith.constant 0 : index
      %c0_35 = arith.constant 0 : index
      %114 = vector.load %arg8[%c0_34, %c0_35] : memref<16x16xf32, #tpu.memory_space<vmem>>, vector<16x16xf32>
      tpu.vector_store %arg8[%c0_34, %c0_35], %3 {strides = array<i32>} : memref<16x16xf32, #tpu.memory_space<vmem>>, vector<16x16xf32>,
      %c0_36 = arith.constant 0 : index
      %c0_37 = arith.constant 0 : index
      %115 = vector.load %arg9[%c0_36, %c0_37] : memref<16x16xf32, #tpu.memory_space<vmem>>, vector<16x16xf32>
      tpu.vector_store %arg9[%c0_36, %c0_37], %49 {strides = array<i32>} : memref<16x16xf32, #tpu.memory_space<vmem>>, vector<16x16xf32>,
      %c0_38 = arith.constant 0 : index
      %c0_39 = arith.constant 0 : index
      %c0_40 = arith.constant 0 : index
      %116 = vector.load %arg10[%c0_38, %c0_39, %c0_40] : memref<3x16x16xf32, #tpu.memory_space<vmem>>, vector<3x16x16xf32>
      tpu.vector_store %arg10[%c0_38, %c0_39, %c0_40], %100 {strides = array<i32>} : memref<3x16x16xf32, #tpu.memory_space<vmem>>, vector<3x16x16xf32>,
      %c0_41 = arith.constant 0 : index
      %c0_42 = arith.constant 0 : index
      %c0_43 = arith.constant 0 : index
      %117 = vector.load %arg11[%c0_41, %c0_42, %c0_43] : memref<3x16x16xf32, #tpu.memory_space<vmem>>, vector<3x16x16xf32>
      tpu.vector_store %arg11[%c0_41, %c0_42, %c0_43], %101 {strides = array<i32>} : memref<3x16x16xf32, #tpu.memory_space<vmem>>, vector<3x16x16xf32>,
    } else {
    }
    return
  }
  func.func @transform_0(%arg0: i32, %arg1: i32) -> (i32, i32, i32, i32, i32) {
    %c0_i32 = arith.constant 0 : i32
    %c0_i32_0 = arith.constant 0 : i32
    %c0_i32_1 = arith.constant 0 : i32
    %c0_i32_2 = arith.constant 0 : i32
    return %arg1, %arg0, %c0_i32, %c0_i32_0, %c0_i32_1 : i32, i32, i32, i32, i32
  }
  func.func @transform_1(%arg0: i32, %arg1: i32) -> (i32, i32, i32, i32) {
    %c0_i32 = arith.constant 0 : i32
    %c0_i32_0 = arith.constant 0 : i32
    %c0_i32_1 = arith.constant 0 : i32
    return %arg1, %arg0, %c0_i32, %c0_i32_0 : i32, i32, i32, i32
  }
  func.func @transform_2(%arg0: i32, %arg1: i32) -> (i32, i32) {
    %c0_i32 = arith.constant 0 : i32
    %c0_i32_0 = arith.constant 0 : i32
    %c0_i32_1 = arith.constant 0 : i32
    return %c0_i32, %c0_i32_0 : i32, i32
  }
  func.func @transform_3(%arg0: i32, %arg1: i32) -> (i32, i32) {
    %c0_i32 = arith.constant 0 : i32
    %c0_i32_0 = arith.constant 0 : i32
    %c0_i32_1 = arith.constant 0 : i32
    return %c0_i32, %c0_i32_0 : i32, i32
  }
  func.func @transform_4(%arg0: i32, %arg1: i32) -> (i32, i32, i32) {
    %c0_i32 = arith.constant 0 : i32
    %c0_i32_0 = arith.constant 0 : i32
    %c0_i32_1 = arith.constant 0 : i32
    return %arg0, %c0_i32, %c0_i32_0 : i32, i32, i32
  }
}

</mosaic_0001>

<llo_original>
// kernel: tpu_custom_call.1
$region0: #{tpu_custom_call.1}
  #allocation0 [shape = 'u32[]', space=smem, size = 0x4, offset = 0x4, fixed_abs, tag = 'smem constant byte address 0x4 - core index']
  #allocation1 [shape = 'u32[72,128]{1,0:T(1,128)}', space=vmem, size = 0x9000, scoped, tag = 'internal scratch']
  #allocation2 [shape = 'f32[3,16,16]{2,1,0:T(8,128)}', space=vmem, size = 0x6000, scoped, tag = 'scratch operand']
  #allocation3 [shape = 'f32[16,16]{1,0:T(8,128)}', space=vmem, size = 0x2000, scoped, tag = 'scratch operand']
  #allocation4 [shape = 'f32[16,16]{1,0:T(8,128)}', space=vmem, size = 0x2000, scoped, tag = 'scratch operand']
  #allocation5 [shape = 'f32[3,16,16]{2,1,0:T(8,128)}', space=vmem, size = 0x6000, scoped, tag = 'scratch operand']
  #allocation6 [shape = 'f32[3,16,16]{2,1,0:T(8,128)}', space=vmem, size = 0x6000, scoped, tag = 'scratch operand']
  %s0 = inlined_call_operand.hbm [shape: f32[3,2,3,16,16], index: 0, kind: input, shape index: {}]
  %s1 = inlined_call_operand.hbm [shape: f32[3,2,16,16], index: 1, kind: input, shape index: {}]
  %s2 = inlined_call_operand.hbm [shape: bf16[16,16], index: 2, kind: input, shape index: {}]
  %s3 = inlined_call_operand.hbm [shape: bf16[16,16], index: 3, kind: input, shape index: {}]
  %s4 = inlined_call_operand.hbm [shape: f32[2,8,128], index: 4, kind: output, shape index: {}]
  %s5 = sld [smem:[#allocation0]]
  $region81: #{tpu_custom_call.1} parent=0
    _
  %s7 = ssub.s32 1, %s5
  %s8 = scalar_select 0, %s7, %s5
  $region1: #{tpu_custom_call.1} parent=0
    #allocation7 [shape = 'u8[49152]{0}', space=vmem, size = 0xc000, scoped, tag = 'input window, operand 0']
    #allocation8 [shape = 's32[2]{0}', space=sflag, size = 0x8, scoped, tag = 'scoped memory for tpu_custom_call.1']
    #allocation9 [shape = 's32[2]{0}', space=sflag, size = 0x8, scoped, tag = 'scoped memory for tpu_custom_call.1']
    #allocation10 [shape = 'u8[16384]{0}', space=vmem, size = 0x4000, scoped, tag = 'input window, operand 1']
    #allocation11 [shape = 's32[2]{0}', space=sflag, size = 0x8, scoped, tag = 'scoped memory for tpu_custom_call.1']
    #allocation12 [shape = 'u8[4096]{0}', space=vmem, size = 0x1000, scoped, tag = 'input window, operand 2, single buffered']
    #allocation13 [shape = 'u8[4096]{0}', space=vmem, size = 0x1000, scoped, tag = 'input window, operand 3, single buffered']
    #allocation14 [shape = 's32[1]{0}', space=sflag, size = 0x4, scoped, tag = 'scoped memory for tpu_custom_call.1']
    #allocation15 [shape = 'u8[8192]{0}', space=vmem, size = 0x2000, scoped, tag = 'output window, operand 0']
    %9 = vsyncpa [#allocation8], 0
    %s10 = scalar_lea.sflag [#allocation8], 1
    %11 = vsyncpa %s10, 0
    %12 = vsyncpa [#allocation11], 0
    %s13 = scalar_lea.sflag [#allocation11], 1
    %14 = vsyncpa %s13, 0
    %15 = vsyncpa [#allocation14], 0
    %16 = vsyncpa [#allocation9], 0
    %s17 = scalar_lea.sflag [#allocation9], 1
    %18 = vsyncpa %s17, 0
    loop: start=0, step=1, limit=8
    $region2: #{tpu_custom_call.1} parent=1 // loop_pre_header
      _
    $region3: #{tpu_custom_call.1} parent=1 // loop_header
      %s20 = sphi 0, %s24
      %p21 = scmp.ge.s32.totalorder %s20, 8
      %s27 = sphi 0, %s39
      %s28 = sphi 0, %s35
      %s29 = sphi 0, %s27
      %s30 = sphi 0, %s28
      %s31 = sphi 0, %s29
      %s32 = sphi 0, %s30
      %s44 = sphi 0, %s46
      %s47 = sphi 0, %s44
      %s48 = sphi 0, %s47
      %s64 = sphi 0, %s48
      %s72 = sphi 0, %s74
      %s75 = sphi 0, %s72
      %s76 = sphi 0, %s75
      %s92 = sphi 0, %s76
      %s96 = sphi 0, %s96
      %s98 = sphi 0, %s96
      %s99 = sphi 0, %s98
      %s113 = sphi 0, %s99
      %s117 = sphi 0, %s117
      %s119 = sphi 0, %s117
      %s120 = sphi 0, %s119
      %s134 = sphi 0, %s120
      %s140 = sphi 0, %s142
      %s143 = sphi 0, %s140
      %s144 = sphi 0, %s143
      %s160 = sphi 0, %s144
    $region4: #{tpu_custom_call.1} parent=1 // loop_header_branch
      %23 = sbr.rel (%p21) target = $region8
    $region5: #{tpu_custom_call.1} parent=1 // loop_body
      %s25 = ssub.s32 %s20, 1
      %s26 = ssub.s32 %s20, 2
      %s33 = sadd.s32 1, %s28
      %p34 = scmp.ge.s32.totalorder %s33, 3
      %s35 = scalar_select %p34, 0, %s33
      %s36 = sadd.s32 1, %s27
      %s37 = scalar_select %p34, %s36, %s27
      %p38 = scmp.ge.s32.totalorder %s37, 2
      %s39 = scalar_select %p38, 0, %s37
      %s40 = ssub.s32 %s28, %s35
      %s41 = ssub.s32 %s27, %s39
      %s42 = sor.u32 %s40, %s41
      %p43 = scmp.eq.s32.totalorder %s42, 0
      %s45 = sadd.s32 %s44, 1
      %s46 = scalar_select %p43, %s44, %s45
      %p49 = pneg %p43
      %p50 = scmp.eq.s32.totalorder %s20, 5
      %p51 = por %p49, %p50
      %p52 = scmp.ne.s32.totalorder %s44, %s47
      %p53 = scmp.eq.s32.totalorder %s20, 0
      %p54 = por %p52, %p53
      %p55 = scmp.ne.s32.totalorder %s44, %s47
      %p56 = scmp.eq.s32.totalorder %s25, 5
      %p57 = por %p55, %p56
      %p58 = scmp.ne.s32.totalorder %s47, %s48
      %p59 = scmp.eq.s32.totalorder %s25, 0
      %p60 = por %p58, %p59
      %p61 = scmp.ne.s32.totalorder %s47, %s48
      %p62 = scmp.eq.s32.totalorder %s26, 5
      %p63 = por %p61, %p62
      %p65 = scmp.ne.s32.totalorder %s48, %s64
      %p66 = scmp.eq.s32.totalorder %s26, 0
      %p67 = por %p65, %p66
      %s68 = ssub.s32 %s28, %s35
      %s69 = ssub.s32 %s27, %s39
      %s70 = sor.u32 %s68, %s69
      %p71 = scmp.eq.s32.totalorder %s70, 0
      %s73 = sadd.s32 %s72, 1
      %s74 = scalar_select %p71, %s72, %s73
      %p77 = pneg %p71
      %p78 = scmp.eq.s32.totalorder %s20, 5
      %p79 = por %p77, %p78
      %p80 = scmp.ne.s32.totalorder %s72, %s75
      %p81 = scmp.eq.s32.totalorder %s20, 0
      %p82 = por %p80, %p81
      %p83 = scmp.ne.s32.totalorder %s72, %s75
      %p84 = scmp.eq.s32.totalorder %s25, 5
      %p85 = por %p83, %p84
      %p86 = scmp.ne.s32.totalorder %s75, %s76
      %p87 = scmp.eq.s32.totalorder %s25, 0
      %p88 = por %p86, %p87
      %p89 = scmp.ne.s32.totalorder %s75, %s76
      %p90 = scmp.eq.s32.totalorder %s26, 5
      %p91 = por %p89, %p90
      %p93 = scmp.ne.s32.totalorder %s76, %s92
      %p94 = scmp.eq.s32.totalorder %s26, 0
      %p95 = por %p93, %p94
      %s97 = sadd.s32 %s96, 1
      %p100 = scmp.eq.s32.totalorder %s20, 5
      %p101 = scmp.ne.s32.totalorder %s96, %s98
      %p102 = scmp.eq.s32.totalorder %s20, 0
      %p103 = por %p101, %p102
      %p104 = scmp.ne.s32.totalorder %s96, %s98
      %p105 = scmp.eq.s32.totalorder %s25, 5
      %p106 = por %p104, %p105
      %p107 = scmp.ne.s32.totalorder %s98, %s99
      %p108 = scmp.eq.s32.totalorder %s25, 0
      %p109 = por %p107, %p108
      %p110 = scmp.ne.s32.totalorder %s98, %s99
      %p111 = scmp.eq.s32.totalorder %s26, 5
      %p112 = por %p110, %p111
      %p114 = scmp.ne.s32.totalorder %s99, %s113
      %p115 = scmp.eq.s32.totalorder %s26, 0
      %p116 = por %p114, %p115
      %s118 = sadd.s32 %s117, 1
      %p121 = scmp.eq.s32.totalorder %s20, 5
      %p122 = scmp.ne.s32.totalorder %s117, %s119
      %p123 = scmp.eq.s32.totalorder %s20, 0
      %p124 = por %p122, %p123
      %p125 = scmp.ne.s32.totalorder %s117, %s119
      %p126 = scmp.eq.s32.totalorder %s25, 5
      %p127 = por %p125, %p126
      %p128 = scmp.ne.s32.totalorder %s119, %s120
      %p129 = scmp.eq.s32.totalorder %s25, 0
      %p130 = por %p128, %p129
      %p131 = scmp.ne.s32.totalorder %s119, %s120
      %p132 = scmp.eq.s32.totalorder %s26, 5
      %p133 = por %p131, %p132
      %p135 = scmp.ne.s32.totalorder %s120, %s134
      %p136 = scmp.eq.s32.totalorder %s26, 0
      %p137 = por %p135, %p136
      %s138 = ssub.s32 %s27, %s39
      %p139 = scmp.eq.s32.totalorder %s138, 0
      %s141 = sadd.s32 %s140, 1
      %s142 = scalar_select %p139, %s140, %s141
      %p145 = pneg %p139
      %p146 = scmp.eq.s32.totalorder %s20, 5
      %p147 = por %p145, %p146
      %p148 = scmp.ne.s32.totalorder %s140, %s143
      %p149 = scmp.eq.s32.totalorder %s20, 0
      %p150 = por %p148, %p149
      %p151 = scmp.ne.s32.totalorder %s140, %s143
      %p152 = scmp.eq.s32.totalorder %s25, 5
      %p153 = por %p151, %p152
      %p154 = scmp.ne.s32.totalorder %s143, %s144
      %p155 = scmp.eq.s32.totalorder %s25, 0
      %p156 = por %p154, %p155
      %p157 = scmp.ne.s32.totalorder %s143, %s144
      %p158 = scmp.eq.s32.totalorder %s26, 5
      %p159 = por %p157, %p158
      %p161 = scmp.ne.s32.totalorder %s144, %s160
      %p162 = scmp.eq.s32.totalorder %s26, 0
      %p163 = por %p161, %p162
      %p164 = scmp.le.s32.totalorder 1, %s20
      %p165 = scmp.lt.s32.totalorder %s20, 7
      %p166 = pnand %p164, %p165
      %p167 = pneg %p166
      // Predicated region
      $region9: #{tpu_custom_call.1} parent=5 // pred_check
        _
      $region10: #{tpu_custom_call.1} parent=5 // pred_check_branch
        %169 = sbr.rel (%p166) target = $region12
      $region11: #{tpu_custom_call.1} parent=5 // pred_region
        %s170 = ssub.s32 %s20, 1
        // Predicated region
        $region13: #{tpu_custom_call.1} parent=11 // pred_check
          %p171 = pneg %p109
        $region14: #{tpu_custom_call.1} parent=11 // pred_check_branch
          %173 = sbr.rel (%p171) target = $region16
        $region15: #{tpu_custom_call.1} parent=11 // pred_region
          %175 = vsyncadd [#allocation11], 0
          %s176 = sshll.u32 %s2, 4
          %s177 = int_to_ptr.hbm [resolvable:$true] %s176
          %s178 = sshll.u32 [#allocation12], 4
          %s179 = int_to_ptr.vmem [resolvable:$true] %s178
          %184 = dma.hbm_to_vmem [thread:$0]  %s177, 128, %s179, [#allocation11], 64, 64, 4
        $region16: #{tpu_custom_call.1} parent=11 // pred_fallthru
          _
        // Predicated region
        $region17: #{tpu_custom_call.1} parent=11 // pred_check
          %p185 = pneg %p130
        $region18: #{tpu_custom_call.1} parent=11 // pred_check_branch
          %187 = sbr.rel (%p185) target = $region20
        $region19: #{tpu_custom_call.1} parent=11 // pred_region
          %189 = vsyncadd [#allocation14], 0
          %s190 = sshll.u32 %s3, 4
          %s191 = int_to_ptr.hbm [resolvable:$true] %s190
          %s192 = sshll.u32 [#allocation13], 4
          %s193 = int_to_ptr.vmem [resolvable:$true] %s192
          %198 = dma.hbm_to_vmem [thread:$0]  %s191, 128, %s193, [#allocation14], 64, 64, 4
        $region20: #{tpu_custom_call.1} parent=11 // pred_fallthru
          _
      $region12: #{tpu_custom_call.1} parent=5 // pred_fallthru
        _
      %p199 = scmp.lt.s32.totalorder %s20, 6
      // Predicated region
      $region21: #{tpu_custom_call.1} parent=5 // pred_check
        %p200 = pneg %p199
      $region22: #{tpu_custom_call.1} parent=5 // pred_check_branch
        %202 = sbr.rel (%p200) target = $region24
      $region23: #{tpu_custom_call.1} parent=5 // pred_region
        // Predicated region
        $region25: #{tpu_custom_call.1} parent=23 // pred_check
          %p203 = pneg %p54
        $region26: #{tpu_custom_call.1} parent=23 // pred_check_branch
          %205 = sbr.rel (%p203) target = $region28
        $region27: #{tpu_custom_call.1} parent=23 // pred_region
          %s206 = sand.u32 %s44, 1
          %s207 = scalar_lea.sflag [#allocation8], %s206
          %s208 = sand.u32 %s44, 1
          %s209 = smul.addr %s208, 48
          %s210 = scalar_lea.vmem [#allocation7], %s209
          %212 = vsyncadd %s207, 0
          %s213 = smul.addr %s27, 6
          %s214 = smul.addr %s28, 12
          %s215 = sadd.s32 %s213, %s214
          %s216 = smul.addr %s215, 8
          %s217 = scalar_lea.hbm %s0, %s216
          %s218 = sshll.u32 %s217, 4
          %s219 = int_to_ptr.hbm [resolvable:$true] %s218
          %s220 = sshll.u32 %s210, 4
          %s221 = int_to_ptr.vmem [resolvable:$true] %s220
          %226 = dma.hbm_to_vmem [thread:$0]  %s219, 768, %s221, %s207, 128, 128, 8
        $region28: #{tpu_custom_call.1} parent=23 // pred_fallthru
          _
        // Predicated region
        $region29: #{tpu_custom_call.1} parent=23 // pred_check
          %p227 = pneg %p82
        $region30: #{tpu_custom_call.1} parent=23 // pred_check_branch
          %229 = sbr.rel (%p227) target = $region32
        $region31: #{tpu_custom_call.1} parent=23 // pred_region
          %s230 = sand.u32 %s20, 1
          %s231 = scalar_lea.sflag [#allocation11], %s230
          %s232 = sand.u32 %s72, 1
          %s233 = smul.addr %s232, 16
          %s234 = scalar_lea.vmem [#allocation10], %s233
          %236 = vsyncadd %s231, 0
          %s237 = smul.addr %s27, 2
          %s238 = smul.addr %s28, 4
          %s239 = sadd.s32 %s237, %s238
          %s240 = smul.addr %s239, 8
          %s241 = scalar_lea.hbm %s1, %s240
          %s242 = sshll.u32 %s241, 4
          %s243 = int_to_ptr.hbm [resolvable:$true] %s242
          %s244 = sshll.u32 %s234, 4
          %s245 = int_to_ptr.vmem [resolvable:$true] %s244
          %250 = dma.hbm_to_vmem [thread:$0]  %s243, 256, %s245, %s231, 128, 128, 8
        $region32: #{tpu_custom_call.1} parent=23 // pred_fallthru
          _
      $region24: #{tpu_custom_call.1} parent=5 // pred_fallthru
        _
      %p251 = scmp.le.s32.totalorder 1, %s20
      %p252 = scmp.lt.s32.totalorder %s20, 7
      %p253 = pnand %p251, %p252
      %p254 = pneg %p253
      // Predicated region
      $region33: #{tpu_custom_call.1} parent=5 // pred_check
        _
      $region34: #{tpu_custom_call.1} parent=5 // pred_check_branch
        %256 = sbr.rel (%p253) target = $region36
      $region35: #{tpu_custom_call.1} parent=5 // pred_region
        %s257 = ssub.s32 %s20, 1
        %s258 = sand.u32 %s47, 1
        %s259 = scalar_lea.sflag [#allocation8], %s258
        %s260 = sand.u32 %s47, 1
        %s261 = smul.addr %s260, 48
        %s262 = scalar_lea.vmem [#allocation7], %s261
        // Predicated region
        $region37: #{tpu_custom_call.1} parent=35 // pred_check
          %p263 = pneg %p60
        $region38: #{tpu_custom_call.1} parent=35 // pred_check_branch
          %265 = sbr.rel (%p263) target = $region40
        $region39: #{tpu_custom_call.1} parent=35 // pred_region
          %267 = dma.done %s259, 768
        $region40: #{tpu_custom_call.1} parent=35 // pred_fallthru
          _
        %s268 = sand.u32 %s25, 1
        %s269 = scalar_lea.sflag [#allocation11], %s268
        %s270 = sand.u32 %s75, 1
        %s271 = smul.addr %s270, 16
        %s272 = scalar_lea.vmem [#allocation10], %s271
        // Predicated region
        $region41: #{tpu_custom_call.1} parent=35 // pred_check
          %p273 = pneg %p88
        $region42: #{tpu_custom_call.1} parent=35 // pred_check_branch
          %275 = sbr.rel (%p273) target = $region44
        $region43: #{tpu_custom_call.1} parent=35 // pred_region
          %277 = dma.done %s269, 256
        $region44: #{tpu_custom_call.1} parent=35 // pred_fallthru
          _
        // Predicated region
        $region45: #{tpu_custom_call.1} parent=35 // pred_check
          %p278 = pneg %p109
        $region46: #{tpu_custom_call.1} parent=35 // pred_check_branch
          %280 = sbr.rel (%p278) target = $region48
        $region47: #{tpu_custom_call.1} parent=35 // pred_region
          %282 = dma.done [#allocation11], 128
        $region48: #{tpu_custom_call.1} parent=35 // pred_fallthru
          _
        // Predicated region
        $region49: #{tpu_custom_call.1} parent=35 // pred_check
          %p283 = pneg %p130
        $region50: #{tpu_custom_call.1} parent=35 // pred_check_branch
          %285 = sbr.rel (%p283) target = $region52
        $region51: #{tpu_custom_call.1} parent=35 // pred_region
          %287 = dma.done [#allocation14], 128
        $region52: #{tpu_custom_call.1} parent=35 // pred_fallthru
          _
        %s288 = sand.u32 %s47, 1
        %s289 = scalar_lea.sflag [#allocation8], %s288
        %s290 = sand.u32 %s47, 1
        %s291 = smul.addr %s290, 48
        %s292 = scalar_lea.vmem [#allocation7], %s291
        %p293 = pneg %p60
        %p294 = pneg %p57
        %s295 = sand.u32 %s25, 1
        %s296 = scalar_lea.sflag [#allocation11], %s295
        %s297 = sand.u32 %s75, 1
        %s298 = smul.addr %s297, 16
        %s299 = scalar_lea.vmem [#allocation10], %s298
        %p300 = pneg %p88
        %p301 = pneg %p85
        %p302 = pneg %p109
        %p303 = pneg %p106
        %p304 = pneg %p130
        %p305 = pneg %p127
        %p306 = pneg %p156
        %p307 = pneg %p153
        %s308 = sand.u32 %s143, 1
        %s309 = scalar_lea.sflag [#allocation9], %s308
        %s310 = sand.u32 %s143, 1
        %s311 = smul.addr %s310, 8
        %s312 = scalar_lea.vmem [#allocation15], %s311
        %v314 = vld [vmem:[%s262] sm:$0xff]
        %v315 = vld [vmem:[%s262 + $0x8] sm:$0xff]
        %v316 = vld [vmem:[%s262 + $0x10] sm:$0xff]
        %v317 = vld [vmem:[%s262 + $0x18] sm:$0xff]
        %v318 = vld [vmem:[%s262 + $0x20] sm:$0xff]
        %v319 = vld [vmem:[%s262 + $0x28] sm:$0xff]
        %v320 = vld [vmem:[%s272] sm:$0xff]
        %v321 = vld [vmem:[%s272 + $0x8] sm:$0xff]
        %v322 = vld [vmem:[#allocation12] sm:$0xf]
        %v323 = vld [vmem:[#allocation12 + $0x4] sm:$0xf]
        %v324 = vld [vmem:[#allocation13] sm:$0xf]
        %v325 = vld [vmem:[#allocation13 + $0x4] sm:$0xf]
        %p326 = scmp.eq.s32.totalorder %s30, 0
        // Predicated region
        $region53: #{tpu_custom_call.1} parent=35 // pred_check
          %p327 = pneg %p326
        $region54: #{tpu_custom_call.1} parent=35 // pred_check_branch
          %329 = sbr.rel (%p327) target = $region56
        $region55: #{tpu_custom_call.1} parent=35 // pred_region
          %330 = vst [vmem:[%s312] sm:$0xff] 0.0
          %vm331 = vcmask 130048
          %332 = vst.msk [vmem:[#allocation2] sm:$0xff] %vm331, %v314
          %333 = vst.msk [vmem:[#allocation2 + $0x8] sm:$0xff] %vm331, %v315
          %334 = vst.msk [vmem:[#allocation2 + $0x10] sm:$0xff] %vm331, %v316
          %335 = vst.msk [vmem:[#allocation2 + $0x18] sm:$0xff] %vm331, %v317
          %336 = vst.msk [vmem:[#allocation2 + $0x20] sm:$0xff] %vm331, %v318
          %337 = vst.msk [vmem:[#allocation2 + $0x28] sm:$0xff] %vm331, %v319
        $region56: #{tpu_custom_call.1} parent=35 // pred_fallthru
          _
        %v338 = vmax.f32 %v314, %v316
        %v339 = vmax.f32 %v315, %v317
        %v340 = vmax.f32 %v338, %v318
        %v341 = vmax.f32 %v339, %v319
        %v342 = vmin.f32 %v314, %v316
        %v343 = vmin.f32 %v315, %v317
        %v344 = vmin.f32 %v342, %v318
        %v345 = vmin.f32 %v343, %v319
        %v346 = vsub.f32 %v340, %v344
        %v347 = vsub.f32 %v341, %v345
        %vm348 = vcmp.gt.f32.partialorder %v346, 0.0
        %vm349 = vcmp.gt.f32.partialorder %v347, 0.0
        %v350 = vsel %vm348, %v346, 1.0
        %v351 = vsel %vm349, %v347, 1.0
        %v352 = vrcp.pop %v350
        %v353 = vrcp.pop %v351
        %v354 = vsub.f32 %v316, %v318
        %v355 = vsub.f32 %v317, %v319
        %v356 = vmul.f32 %v354, %v352
        %v357 = vmul.f32 %v355, %v353
        %vm358 = vcmp.lt.f32.partialorder %v356, 0.0
        %vm359 = vcmp.lt.f32.partialorder %v357, 0.0
        %v360 = vadd.f32 %v356, 6.0
        %v361 = vadd.f32 %v357, 6.0
        %v362 = vsel %vm358, %v360, %v356
        %v363 = vsel %vm359, %v361, %v357
        %v364 = vsub.f32 %v318, %v314
        %v365 = vsub.f32 %v319, %v315
        %v366 = vmul.f32 %v364, %v352
        %v367 = vmul.f32 %v365, %v353
        %v368 = vadd.f32 %v366, 2.0
        %v369 = vadd.f32 %v367, 2.0
        %v370 = vsub.f32 %v314, %v316
        %v371 = vsub.f32 %v315, %v317
        %v372 = vmul.f32 %v370, %v352
        %v373 = vmul.f32 %v371, %v353
        %v374 = vadd.f32 %v372, 4.0
        %v375 = vadd.f32 %v373, 4.0
        %vm376 = vcmp.eq.f32.partialorder %v340, %v314
        %vm377 = vcmp.eq.f32.partialorder %v341, %v315
        %vm378 = vcmp.eq.f32.partialorder %v340, %v316
        %vm379 = vcmp.eq.f32.partialorder %v341, %v317
        %v380 = vsel %vm378, %v368, %v374
        %v381 = vsel %vm379, %v369, %v375
        %v382 = vsel %vm376, %v362, %v380
        %v383 = vsel %vm377, %v363, %v381
        %v384 = vsel %vm348, %v382, 0.0
        %v385 = vsel %vm349, %v383, 0.0
        %v386 = vmul.f32 %v384, 0.16666667
        %v387 = vmul.f32 %v385, 0.16666667
        %v388 = vpack.c.bf16 %v314, %v314
        %v389 = vpack.c.bf16 %v315, %v315
        %v390 = vpack.c.bf16 %v316, %v316
        %v391 = vpack.c.bf16 %v317, %v317
        %v392 = vpack.c.bf16 %v318, %v318
        %v393 = vpack.c.bf16 %v319, %v319
        %v394 = vld [vmem:[#allocation2] sm:$0xff]
        %v395 = vld [vmem:[#allocation2 + $0x8] sm:$0xff]
        %v396 = vld [vmem:[#allocation2 + $0x10] sm:$0xff]
        %v397 = vld [vmem:[#allocation2 + $0x18] sm:$0xff]
        %v398 = vld [vmem:[#allocation2 + $0x20] sm:$0xff]
        %v399 = vld [vmem:[#allocation2 + $0x28] sm:$0xff]
        %v400 = vmul.f32 %v394, %v314
        %v401 = vmul.f32 %v395, %v315
        %v402 = vmul.f32 %v396, %v316
        %v403 = vmul.f32 %v397, %v317
        %v404 = vmul.f32 %v398, %v318
        %v405 = vmul.f32 %v399, %v319
        %v406 = vpack.c.bf16 %v400, %v400
        %v407 = vpack.c.bf16 %v401, %v401
        %v408 = vpack.c.bf16 %v402, %v402
        %v409 = vpack.c.bf16 %v403, %v403
        %v410 = vpack.c.bf16 %v404, %v404
        %v411 = vpack.c.bf16 %v405, %v405
        %v412 = vunpack.c.l.bf16 %v388
        %v413 = vunpack.c.l.bf16 %v389
        %v414 = vunpack.c.l.bf16 %v390
        %v415 = vunpack.c.l.bf16 %v391
        %v416 = vunpack.c.l.bf16 %v392
        %v417 = vunpack.c.l.bf16 %v393
        %v418 = vmul.f32 %v412, %v412
        %v419 = vmul.f32 %v413, %v413
        %v420 = vmul.f32 %v414, %v414
        %v421 = vmul.f32 %v415, %v415
        %v422 = vmul.f32 %v416, %v416
        %v423 = vmul.f32 %v417, %v417
        %v424 = vpack.c.bf16 %v418, %v418
        %v425 = vpack.c.bf16 %v419, %v419
        %v426 = vpack.c.bf16 %v420, %v420
        %v427 = vpack.c.bf16 %v421, %v421
        %v428 = vpack.c.bf16 %v422, %v422
        %v429 = vpack.c.bf16 %v423, %v423
        %v448 = vunpack.c.l.b16 %v388
        %v449 = vunpack.c.l.b16 %v389
        %v450 = vunpack.c.l.b16 %v390
        %v451 = vunpack.c.l.b16 %v391
        %v452 = vunpack.c.l.b16 %v392
        %v453 = vunpack.c.l.b16 %v393
        %v454 = vunpack.c.l.b16 %v424
        %v455 = vunpack.c.l.b16 %v425
        %v456 = vunpack.c.l.b16 %v426
        %v457 = vunpack.c.l.b16 %v427
        %v458 = vunpack.c.l.b16 %v428
        %v459 = vunpack.c.l.b16 %v429
        %v460 = vunpack.c.l.b16 %v406
        %v461 = vunpack.c.l.b16 %v407
        %v462 = vunpack.c.l.b16 %v408
        %v463 = vunpack.c.l.b16 %v409
        %v464 = vunpack.c.l.b16 %v410
        %v465 = vunpack.c.l.b16 %v411
        %v466 = vpack.c.b16 %v449, %v448
        %v467 = vpack.c.b16 %v451, %v450
        %v468 = vpack.c.b16 %v453, %v452
        %v469 = vpack.c.b16 %v455, %v454
        %v470 = vpack.c.b16 %v457, %v456
        %v471 = vpack.c.b16 %v459, %v458
        %v472 = vpack.c.b16 %v461, %v460
        %v473 = vpack.c.b16 %v463, %v462
        %v474 = vpack.c.b16 %v465, %v464
        %v477 = vunpack.c.l.b16 %v324
        %v478 = vunpack.c.l.b16 %v325
        %v479 = vpack.c.b16 %v478, %v477
        %vm481 = vcmask 130048
        %v483 = vsel %vm481, %v466, 0
        %v486 = vsel %vm481, %v467, 0
        %v489 = vsel %vm481, %v468, 0
        %v492 = vsel %vm481, %v469, 0
        %v495 = vsel %vm481, %v470, 0
        %v498 = vsel %vm481, %v471, 0
        %v501 = vsel %vm481, %v472, 0
        %v504 = vsel %vm481, %v473, 0
        %v507 = vsel %vm481, %v474, 0
        %509 = vmatpush.bf16.msra.mxu0 0
        %510 = vmatpush.bf16.msra.mxu0 0
        %511 = vmatpush.bf16.msra.mxu0 0
        %512 = vmatpush.bf16.msra.mxu0 0
        %513 = vmatpush.bf16.msra.mxu0 0
        %514 = vmatpush.bf16.msra.mxu0 0
        %515 = vmatpush.bf16.msra.mxu0 0
        %516 = vmatpush.bf16.msra.mxu0 %v479
        %517 = vmatmul.bf16.gmra.mxu0 %v483
        %v518 = vpop.f32.mrf.mxu0
        %v519 = vadd.f32 0.0, %v518
        %v520 = vpop.f32.mrf.mxu0
        %v521 = vadd.f32 0.0, %v520
        %522 = vmatmul.bf16.gmra.mxu0 %v486
        %v523 = vpop.f32.mrf.mxu0
        %v524 = vadd.f32 0.0, %v523
        %v525 = vpop.f32.mrf.mxu0
        %v526 = vadd.f32 0.0, %v525
        %527 = vmatmul.bf16.gmra.mxu0 %v489
        %v528 = vpop.f32.mrf.mxu0
        %v529 = vadd.f32 0.0, %v528
        %v530 = vpop.f32.mrf.mxu0
        %v531 = vadd.f32 0.0, %v530
        %532 = vmatmul.bf16.gmra.mxu0 %v492
        %v533 = vpop.f32.mrf.mxu0
        %v534 = vadd.f32 0.0, %v533
        %v535 = vpop.f32.mrf.mxu0
        %v536 = vadd.f32 0.0, %v535
        %537 = vmatmul.bf16.gmra.mxu0 %v495
        %v538 = vpop.f32.mrf.mxu0
        %v539 = vadd.f32 0.0, %v538
        %v540 = vpop.f32.mrf.mxu0
        %v541 = vadd.f32 0.0, %v540
        %542 = vmatmul.bf16.gmra.mxu0 %v498
        %v543 = vpop.f32.mrf.mxu0
        %v544 = vadd.f32 0.0, %v543
        %v545 = vpop.f32.mrf.mxu0
        %v546 = vadd.f32 0.0, %v545
        %547 = vmatmul.bf16.gmra.mxu0 %v501
        %v548 = vpop.f32.mrf.mxu0
        %v549 = vadd.f32 0.0, %v548
        %v550 = vpop.f32.mrf.mxu0
        %v551 = vadd.f32 0.0, %v550
        %552 = vmatmul.bf16.gmra.mxu0 %v504
        %v553 = vpop.f32.mrf.mxu0
        %v554 = vadd.f32 0.0, %v553
        %v555 = vpop.f32.mrf.mxu0
        %v556 = vadd.f32 0.0, %v555
        %557 = vmatmul.bf16.gmra.mxu0 %v507
        %v558 = vpop.f32.mrf.mxu0
        %v559 = vadd.f32 0.0, %v558
        %v560 = vpop.f32.mrf.mxu0
        %v561 = vadd.f32 0.0, %v560
        %562 = vdwg.mxu0
        %563 = vxpose.xlu0.b32.start [1/16] %v519, 128
        %564 = vxpose.xlu0.b32.cont [2/16] %v521, 128
        %565 = vxpose.xlu0.b32.cont [3/16] 0.0, 128
        %566 = vxpose.xlu0.b32.cont [4/16] 0.0, 128
        %567 = vxpose.xlu0.b32.cont [5/16] 0.0, 128
        %568 = vxpose.xlu0.b32.cont [6/16] 0.0, 128
        %569 = vxpose.xlu0.b32.cont [7/16] 0.0, 128
        %570 = vxpose.xlu0.b32.cont [8/16] 0.0, 128
        %571 = vxpose.xlu0.b32.cont [9/16] 0.0, 128
        %572 = vxpose.xlu0.b32.cont [10/16] 0.0, 128
        %573 = vxpose.xlu0.b32.cont [11/16] 0.0, 128
        %574 = vxpose.xlu0.b32.cont [12/16] 0.0, 128
        %575 = vxpose.xlu0.b32.cont [13/16] 0.0, 128
        %576 = vxpose.xlu0.b32.cont [14/16] 0.0, 128
        %577 = vxpose.xlu0.b32.cont [15/16] 0.0, 128
        %578 = vxpose.xlu0.b32.end [16/16] 0.0, 128
        %v579 = vpop.trf.xlu0
        %v580 = vpop.trf.xlu0
        %v581 = vpop.trf.xlu0
        %v582 = vpop.trf.xlu0
        %v583 = vpop.trf.xlu0
        %v584 = vpop.trf.xlu0
        %v585 = vpop.trf.xlu0
        %v586 = vpop.trf.xlu0
        %v587 = vpop.trf.xlu0
        %v588 = vpop.trf.xlu0
        %v589 = vpop.trf.xlu0
        %v590 = vpop.trf.xlu0
        %v591 = vpop.trf.xlu0
        %v592 = vpop.trf.xlu0
        %v593 = vpop.trf.xlu0
        %v594 = vpop.trf.xlu0
        %595 = vxpose.xlu0.b32.start [1/16] %v524, 128
        %596 = vxpose.xlu0.b32.cont [2/16] %v526, 128
        %597 = vxpose.xlu0.b32.cont [3/16] 0.0, 128
        %598 = vxpose.xlu0.b32.cont [4/16] 0.0, 128
        %599 = vxpose.xlu0.b32.cont [5/16] 0.0, 128
        %600 = vxpose.xlu0.b32.cont [6/16] 0.0, 128
        %601 = vxpose.xlu0.b32.cont [7/16] 0.0, 128
        %602 = vxpose.xlu0.b32.cont [8/16] 0.0, 128
        %603 = vxpose.xlu0.b32.cont [9/16] 0.0, 128
        %604 = vxpose.xlu0.b32.cont [10/16] 0.0, 128
        %605 = vxpose.xlu0.b32.cont [11/16] 0.0, 128
        %606 = vxpose.xlu0.b32.cont [12/16] 0.0, 128
        %607 = vxpose.xlu0.b32.cont [13/16] 0.0, 128
        %608 = vxpose.xlu0.b32.cont [14/16] 0.0, 128
        %609 = vxpose.xlu0.b32.cont [15/16] 0.0, 128
        %610 = vxpose.xlu0.b32.end [16/16] 0.0, 128
        %v611 = vpop.trf.xlu0
        %v612 = vpop.trf.xlu0
        %v613 = vpop.trf.xlu0
        %v614 = vpop.trf.xlu0
        %v615 = vpop.trf.xlu0
        %v616 = vpop.trf.xlu0
        %v617 = vpop.trf.xlu0
        %v618 = vpop.trf.xlu0
        %v619 = vpop.trf.xlu0
        %v620 = vpop.trf.xlu0
        %v621 = vpop.trf.xlu0
        %v622 = vpop.trf.xlu0
        %v623 = vpop.trf.xlu0
        %v624 = vpop.trf.xlu0
        %v625 = vpop.trf.xlu0
        %v626 = vpop.trf.xlu0
        %627 = vxpose.xlu0.b32.start [1/16] %v529, 128
        %628 = vxpose.xlu0.b32.cont [2/16] %v531, 128
        %629 = vxpose.xlu0.b32.cont [3/16] 0.0, 128
        %630 = vxpose.xlu0.b32.cont [4/16] 0.0, 128
        %631 = vxpose.xlu0.b32.cont [5/16] 0.0, 128
        %632 = vxpose.xlu0.b32.cont [6/16] 0.0, 128
        %633 = vxpose.xlu0.b32.cont [7/16] 0.0, 128
        %634 = vxpose.xlu0.b32.cont [8/16] 0.0, 128
        %635 = vxpose.xlu0.b32.cont [9/16] 0.0, 128
        %636 = vxpose.xlu0.b32.cont [10/16] 0.0, 128
        %637 = vxpose.xlu0.b32.cont [11/16] 0.0, 128
        %638 = vxpose.xlu0.b32.cont [12/16] 0.0, 128
        %639 = vxpose.xlu0.b32.cont [13/16] 0.0, 128
        %640 = vxpose.xlu0.b32.cont [14/16] 0.0, 128
        %641 = vxpose.xlu0.b32.cont [15/16] 0.0, 128
        %642 = vxpose.xlu0.b32.end [16/16] 0.0, 128
        %v643 = vpop.trf.xlu0
        %v644 = vpop.trf.xlu0
        %v645 = vpop.trf.xlu0
        %v646 = vpop.trf.xlu0
        %v647 = vpop.trf.xlu0
        %v648 = vpop.trf.xlu0
        %v649 = vpop.trf.xlu0
        %v650 = vpop.trf.xlu0
        %v651 = vpop.trf.xlu0
        %v652 = vpop.trf.xlu0
        %v653 = vpop.trf.xlu0
        %v654 = vpop.trf.xlu0
        %v655 = vpop.trf.xlu0
        %v656 = vpop.trf.xlu0
        %v657 = vpop.trf.xlu0
        %v658 = vpop.trf.xlu0
        %659 = vxpose.xlu0.b32.start [1/16] %v534, 128
        %660 = vxpose.xlu0.b32.cont [2/16] %v536, 128
        %661 = vxpose.xlu0.b32.cont [3/16] 0.0, 128
        %662 = vxpose.xlu0.b32.cont [4/16] 0.0, 128
        %663 = vxpose.xlu0.b32.cont [5/16] 0.0, 128
        %664 = vxpose.xlu0.b32.cont [6/16] 0.0, 128
        %665 = vxpose.xlu0.b32.cont [7/16] 0.0, 128
        %666 = vxpose.xlu0.b32.cont [8/16] 0.0, 128
        %667 = vxpose.xlu0.b32.cont [9/16] 0.0, 128
        %668 = vxpose.xlu0.b32.cont [10/16] 0.0, 128
        %669 = vxpose.xlu0.b32.cont [11/16] 0.0, 128
        %670 = vxpose.xlu0.b32.cont [12/16] 0.0, 128
        %671 = vxpose.xlu0.b32.cont [13/16] 0.0, 128
        %672 = vxpose.xlu0.b32.cont [14/16] 0.0, 128
        %673 = vxpose.xlu0.b32.cont [15/16] 0.0, 128
        %674 = vxpose.xlu0.b32.end [16/16] 0.0, 128
        %v675 = vpop.trf.xlu0
        %v676 = vpop.trf.xlu0
        %v677 = vpop.trf.xlu0
        %v678 = vpop.trf.xlu0
        %v679 = vpop.trf.xlu0
        %v680 = vpop.trf.xlu0
        %v681 = vpop.trf.xlu0
        %v682 = vpop.trf.xlu0
        %v683 = vpop.trf.xlu0
        %v684 = vpop.trf.xlu0
        %v685 = vpop.trf.xlu0
        %v686 = vpop.trf.xlu0
        %v687 = vpop.trf.xlu0
        %v688 = vpop.trf.xlu0
        %v689 = vpop.trf.xlu0
        %v690 = vpop.trf.xlu0
        %691 = vxpose.xlu0.b32.start [1/16] %v539, 128
        %692 = vxpose.xlu0.b32.cont [2/16] %v541, 128
        %693 = vxpose.xlu0.b32.cont [3/16] 0.0, 128
        %694 = vxpose.xlu0.b32.cont [4/16] 0.0, 128
        %695 = vxpose.xlu0.b32.cont [5/16] 0.0, 128
        %696 = vxpose.xlu0.b32.cont [6/16] 0.0, 128
        %697 = vxpose.xlu0.b32.cont [7/16] 0.0, 128
        %698 = vxpose.xlu0.b32.cont [8/16] 0.0, 128
        %699 = vxpose.xlu0.b32.cont [9/16] 0.0, 128
        %700 = vxpose.xlu0.b32.cont [10/16] 0.0, 128
        %701 = vxpose.xlu0.b32.cont [11/16] 0.0, 128
        %702 = vxpose.xlu0.b32.cont [12/16] 0.0, 128
        %703 = vxpose.xlu0.b32.cont [13/16] 0.0, 128
        %704 = vxpose.xlu0.b32.cont [14/16] 0.0, 128
        %705 = vxpose.xlu0.b32.cont [15/16] 0.0, 128
        %706 = vxpose.xlu0.b32.end [16/16] 0.0, 128
        %v707 = vpop.trf.xlu0
        %v708 = vpop.trf.xlu0
        %v709 = vpop.trf.xlu0
        %v710 = vpop.trf.xlu0
        %v711 = vpop.trf.xlu0
        %v712 = vpop.trf.xlu0
        %v713 = vpop.trf.xlu0
        %v714 = vpop.trf.xlu0
        %v715 = vpop.trf.xlu0
        %v716 = vpop.trf.xlu0
        %v717 = vpop.trf.xlu0
        %v718 = vpop.trf.xlu0
        %v719 = vpop.trf.xlu0
        %v720 = vpop.trf.xlu0
        %v721 = vpop.trf.xlu0
        %v722 = vpop.trf.xlu0
        %723 = vxpose.xlu0.b32.start [1/16] %v544, 128
        %724 = vxpose.xlu0.b32.cont [2/16] %v546, 128
        %725 = vxpose.xlu0.b32.cont [3/16] 0.0, 128
        %726 = vxpose.xlu0.b32.cont [4/16] 0.0, 128
        %727 = vxpose.xlu0.b32.cont [5/16] 0.0, 128
        %728 = vxpose.xlu0.b32.cont [6/16] 0.0, 128
        %729 = vxpose.xlu0.b32.cont [7/16] 0.0, 128
        %730 = vxpose.xlu0.b32.cont [8/16] 0.0, 128
        %731 = vxpose.xlu0.b32.cont [9/16] 0.0, 128
        %732 = vxpose.xlu0.b32.cont [10/16] 0.0, 128
        %733 = vxpose.xlu0.b32.cont [11/16] 0.0, 128
        %734 = vxpose.xlu0.b32.cont [12/16] 0.0, 128
        %735 = vxpose.xlu0.b32.cont [13/16] 0.0, 128
        %736 = vxpose.xlu0.b32.cont [14/16] 0.0, 128
        %737 = vxpose.xlu0.b32.cont [15/16] 0.0, 128
        %738 = vxpose.xlu0.b32.end [16/16] 0.0, 128
        %v739 = vpop.trf.xlu0
        %v740 = vpop.trf.xlu0
        %v741 = vpop.trf.xlu0
        %v742 = vpop.trf.xlu0
        %v743 = vpop.trf.xlu0
        %v744 = vpop.trf.xlu0
        %v745 = vpop.trf.xlu0
        %v746 = vpop.trf.xlu0
        %v747 = vpop.trf.xlu0
        %v748 = vpop.trf.xlu0
        %v749 = vpop.trf.xlu0
        %v750 = vpop.trf.xlu0
        %v751 = vpop.trf.xlu0
        %v752 = vpop.trf.xlu0
        %v753 = vpop.trf.xlu0
        %v754 = vpop.trf.xlu0
        %755 = vxpose.xlu0.b32.start [1/16] %v549, 128
        %756 = vxpose.xlu0.b32.cont [2/16] %v551, 128
        %757 = vxpose.xlu0.b32.cont [3/16] 0.0, 128
        %758 = vxpose.xlu0.b32.cont [4/16] 0.0, 128
        %759 = vxpose.xlu0.b32.cont [5/16] 0.0, 128
        %760 = vxpose.xlu0.b32.cont [6/16] 0.0, 128
        %761 = vxpose.xlu0.b32.cont [7/16] 0.0, 128
        %762 = vxpose.xlu0.b32.cont [8/16] 0.0, 128
        %763 = vxpose.xlu0.b32.cont [9/16] 0.0, 128
        %764 = vxpose.xlu0.b32.cont [10/16] 0.0, 128
        %765 = vxpose.xlu0.b32.cont [11/16] 0.0, 128
        %766 = vxpose.xlu0.b32.cont [12/16] 0.0, 128
        %767 = vxpose.xlu0.b32.cont [13/16] 0.0, 128
        %768 = vxpose.xlu0.b32.cont [14/16] 0.0, 128
        %769 = vxpose.xlu0.b32.cont [15/16] 0.0, 128
        %770 = vxpose.xlu0.b32.end [16/16] 0.0, 128
        %v771 = vpop.trf.xlu0
        %v772 = vpop.trf.xlu0
        %v773 = vpop.trf.xlu0
        %v774 = vpop.trf.xlu0
        %v775 = vpop.trf.xlu0
        %v776 = vpop.trf.xlu0
        %v777 = vpop.trf.xlu0
        %v778 = vpop.trf.xlu0
        %v779 = vpop.trf.xlu0
        %v780 = vpop.trf.xlu0
        %v781 = vpop.trf.xlu0
        %v782 = vpop.trf.xlu0
        %v783 = vpop.trf.xlu0
        %v784 = vpop.trf.xlu0
        %v785 = vpop.trf.xlu0
        %v786 = vpop.trf.xlu0
        %787 = vxpose.xlu0.b32.start [1/16] %v554, 128
        %788 = vxpose.xlu0.b32.cont [2/16] %v556, 128
        %789 = vxpose.xlu0.b32.cont [3/16] 0.0, 128
        %790 = vxpose.xlu0.b32.cont [4/16] 0.0, 128
        %791 = vxpose.xlu0.b32.cont [5/16] 0.0, 128
        %792 = vxpose.xlu0.b32.cont [6/16] 0.0, 128
        %793 = vxpose.xlu0.b32.cont [7/16] 0.0, 128
        %794 = vxpose.xlu0.b32.cont [8/16] 0.0, 128
        %795 = vxpose.xlu0.b32.cont [9/16] 0.0, 128
        %796 = vxpose.xlu0.b32.cont [10/16] 0.0, 128
        %797 = vxpose.xlu0.b32.cont [11/16] 0.0, 128
        %798 = vxpose.xlu0.b32.cont [12/16] 0.0, 128
        %799 = vxpose.xlu0.b32.cont [13/16] 0.0, 128
        %800 = vxpose.xlu0.b32.cont [14/16] 0.0, 128
        %801 = vxpose.xlu0.b32.cont [15/16] 0.0, 128
        %802 = vxpose.xlu0.b32.end [16/16] 0.0, 128
        %v803 = vpop.trf.xlu0
        %v804 = vpop.trf.xlu0
        %v805 = vpop.trf.xlu0
        %v806 = vpop.trf.xlu0
        %v807 = vpop.trf.xlu0
        %v808 = vpop.trf.xlu0
        %v809 = vpop.trf.xlu0
        %v810 = vpop.trf.xlu0
        %v811 = vpop.trf.xlu0
        %v812 = vpop.trf.xlu0
        %v813 = vpop.trf.xlu0
        %v814 = vpop.trf.xlu0
        %v815 = vpop.trf.xlu0
        %v816 = vpop.trf.xlu0
        %v817 = vpop.trf.xlu0
        %v818 = vpop.trf.xlu0
        %819 = vxpose.xlu0.b32.start [1/16] %v559, 128
        %820 = vxpose.xlu0.b32.cont [2/16] %v561, 128
        %821 = vxpose.xlu0.b32.cont [3/16] 0.0, 128
        %822 = vxpose.xlu0.b32.cont [4/16] 0.0, 128
        %823 = vxpose.xlu0.b32.cont [5/16] 0.0, 128
        %824 = vxpose.xlu0.b32.cont [6/16] 0.0, 128
        %825 = vxpose.xlu0.b32.cont [7/16] 0.0, 128
        %826 = vxpose.xlu0.b32.cont [8/16] 0.0, 128
        %827 = vxpose.xlu0.b32.cont [9/16] 0.0, 128
        %828 = vxpose.xlu0.b32.cont [10/16] 0.0, 128
        %829 = vxpose.xlu0.b32.cont [11/16] 0.0, 128
        %830 = vxpose.xlu0.b32.cont [12/16] 0.0, 128
        %831 = vxpose.xlu0.b32.cont [13/16] 0.0, 128
        %832 = vxpose.xlu0.b32.cont [14/16] 0.0, 128
        %833 = vxpose.xlu0.b32.cont [15/16] 0.0, 128
        %834 = vxpose.xlu0.b32.end [16/16] 0.0, 128
        %v835 = vpop.trf.xlu0
        %v836 = vpop.trf.xlu0
        %v837 = vpop.trf.xlu0
        %v838 = vpop.trf.xlu0
        %v839 = vpop.trf.xlu0
        %v840 = vpop.trf.xlu0
        %v841 = vpop.trf.xlu0
        %v842 = vpop.trf.xlu0
        %v843 = vpop.trf.xlu0
        %v844 = vpop.trf.xlu0
        %v845 = vpop.trf.xlu0
        %v846 = vpop.trf.xlu0
        %v847 = vpop.trf.xlu0
        %v848 = vpop.trf.xlu0
        %v849 = vpop.trf.xlu0
        %v850 = vpop.trf.xlu0
        %v851 = vpack.c.bf16 %v579, %v579
        %v852 = vpack.c.bf16 %v580, %v580
        %v853 = vpack.c.bf16 %v611, %v611
        %v854 = vpack.c.bf16 %v612, %v612
        %v855 = vpack.c.bf16 %v643, %v643
        %v856 = vpack.c.bf16 %v644, %v644
        %v857 = vpack.c.bf16 %v675, %v675
        %v858 = vpack.c.bf16 %v676, %v676
        %v859 = vpack.c.bf16 %v707, %v707
        %v860 = vpack.c.bf16 %v708, %v708
        %v861 = vpack.c.bf16 %v739, %v739
        %v862 = vpack.c.bf16 %v740, %v740
        %v863 = vpack.c.bf16 %v771, %v771
        %v864 = vpack.c.bf16 %v772, %v772
        %v865 = vpack.c.bf16 %v803, %v803
        %v866 = vpack.c.bf16 %v804, %v804
        %v867 = vpack.c.bf16 %v835, %v835
        %v868 = vpack.c.bf16 %v836, %v836
        %v887 = vunpack.c.l.b16 %v851
        %v888 = vunpack.c.l.b16 %v852
        %v889 = vunpack.c.l.b16 %v853
        %v890 = vunpack.c.l.b16 %v854
        %v891 = vunpack.c.l.b16 %v855
        %v892 = vunpack.c.l.b16 %v856
        %v893 = vunpack.c.l.b16 %v857
        %v894 = vunpack.c.l.b16 %v858
        %v895 = vunpack.c.l.b16 %v859
        %v896 = vunpack.c.l.b16 %v860
        %v897 = vunpack.c.l.b16 %v861
        %v898 = vunpack.c.l.b16 %v862
        %v899 = vunpack.c.l.b16 %v863
        %v900 = vunpack.c.l.b16 %v864
        %v901 = vunpack.c.l.b16 %v865
        %v902 = vunpack.c.l.b16 %v866
        %v903 = vunpack.c.l.b16 %v867
        %v904 = vunpack.c.l.b16 %v868
        %v905 = vpack.c.b16 %v888, %v887
        %v906 = vpack.c.b16 %v890, %v889
        %v907 = vpack.c.b16 %v892, %v891
        %v908 = vpack.c.b16 %v894, %v893
        %v909 = vpack.c.b16 %v896, %v895
        %v910 = vpack.c.b16 %v898, %v897
        %v911 = vpack.c.b16 %v900, %v899
        %v912 = vpack.c.b16 %v902, %v901
        %v913 = vpack.c.b16 %v904, %v903
        %v916 = vunpack.c.l.b16 %v322
        %v917 = vunpack.c.l.b16 %v323
        %v918 = vpack.c.b16 %v917, %v916
        %v921 = vsel %vm481, %v905, 0
        %v924 = vsel %vm481, %v906, 0
        %v927 = vsel %vm481, %v907, 0
        %v930 = vsel %vm481, %v908, 0
        %v933 = vsel %vm481, %v909, 0
        %v936 = vsel %vm481, %v910, 0
        %v939 = vsel %vm481, %v911, 0
        %v942 = vsel %vm481, %v912, 0
        %v945 = vsel %vm481, %v913, 0
        %947 = vmatpush.bf16.msra.mxu0 0
        %948 = vmatpush.bf16.msra.mxu0 0
        %949 = vmatpush.bf16.msra.mxu0 0
        %950 = vmatpush.bf16.msra.mxu0 0
        %951 = vmatpush.bf16.msra.mxu0 0
        %952 = vmatpush.bf16.msra.mxu0 0
        %953 = vmatpush.bf16.msra.mxu0 0
        %954 = vmatpush.bf16.msra.mxu0 %v918
        %955 = vmatmul.bf16.gmra.mxu0 %v921
        %v956 = vpop.f32.mrf.mxu0
        %v957 = vadd.f32 0.0, %v956
        %v958 = vpop.f32.mrf.mxu0
        %v959 = vadd.f32 0.0, %v958
        %960 = vmatmul.bf16.gmra.mxu0 %v924
        %v961 = vpop.f32.mrf.mxu0
        %v962 = vadd.f32 0.0, %v961
        %v963 = vpop.f32.mrf.mxu0
        %v964 = vadd.f32 0.0, %v963
        %965 = vmatmul.bf16.gmra.mxu0 %v927
        %v966 = vpop.f32.mrf.mxu0
        %v967 = vadd.f32 0.0, %v966
        %v968 = vpop.f32.mrf.mxu0
        %v969 = vadd.f32 0.0, %v968
        %970 = vmatmul.bf16.gmra.mxu0 %v930
        %v971 = vpop.f32.mrf.mxu0
        %v972 = vadd.f32 0.0, %v971
        %v973 = vpop.f32.mrf.mxu0
        %v974 = vadd.f32 0.0, %v973
        %975 = vmatmul.bf16.gmra.mxu0 %v933
        %v976 = vpop.f32.mrf.mxu0
        %v977 = vadd.f32 0.0, %v976
        %v978 = vpop.f32.mrf.mxu0
        %v979 = vadd.f32 0.0, %v978
        %980 = vmatmul.bf16.gmra.mxu0 %v936
        %v981 = vpop.f32.mrf.mxu0
        %v982 = vadd.f32 0.0, %v981
        %v983 = vpop.f32.mrf.mxu0
        %v984 = vadd.f32 0.0, %v983
        %985 = vmatmul.bf16.gmra.mxu0 %v939
        %v986 = vpop.f32.mrf.mxu0
        %v987 = vadd.f32 0.0, %v986
        %v988 = vpop.f32.mrf.mxu0
        %v989 = vadd.f32 0.0, %v988
        %990 = vmatmul.bf16.gmra.mxu0 %v942
        %v991 = vpop.f32.mrf.mxu0
        %v992 = vadd.f32 0.0, %v991
        %v993 = vpop.f32.mrf.mxu0
        %v994 = vadd.f32 0.0, %v993
        %995 = vmatmul.bf16.gmra.mxu0 %v945
        %v996 = vpop.f32.mrf.mxu0
        %v997 = vadd.f32 0.0, %v996
        %v998 = vpop.f32.mrf.mxu0
        %v999 = vadd.f32 0.0, %v998
        %1000 = vdwg.mxu0
        %v1001 = vlaneseq
        %v1002 = vshrl.u32 %v1001, 7
        %p1003 = scmp.gt.s32.totalorder %s30, 0
        // Predicated region
        $region57: #{tpu_custom_call.1} parent=35 // pred_check
          %p1004 = pneg %p1003
        $region58: #{tpu_custom_call.1} parent=35 // pred_check_branch
          %1006 = sbr.rel (%p1004) target = $region60
        $region59: #{tpu_custom_call.1} parent=35 // pred_region
          %v1007 = vld [vmem:[#allocation2] sm:$0xff]
          %v1008 = vld [vmem:[#allocation2 + $0x8] sm:$0xff]
          %v1009 = vld [vmem:[#allocation2 + $0x10] sm:$0xff]
          %v1010 = vld [vmem:[#allocation2 + $0x18] sm:$0xff]
          %v1011 = vld [vmem:[#allocation2 + $0x20] sm:$0xff]
          %v1012 = vld [vmem:[#allocation2 + $0x28] sm:$0xff]
          %v1013 = vsub.f32 %v1007, %v314
          %v1014 = vsub.f32 %v1008, %v315
          %v1015 = vsub.f32 %v1009, %v316
          %v1016 = vsub.f32 %v1010, %v317
          %v1017 = vsub.f32 %v1011, %v318
          %v1018 = vsub.f32 %v1012, %v319
          %v1019 = vmul.f32 %v1013, %v1013
          %v1020 = vmul.f32 %v1014, %v1014
          %v1021 = vmul.f32 %v1015, %v1015
          %v1022 = vmul.f32 %v1016, %v1016
          %v1023 = vmul.f32 %v1017, %v1017
          %v1024 = vmul.f32 %v1018, %v1018
          %v1025 = vsel %vm481, %v1019, 0.0
          %v1026 = vsel %vm481, %v1020, 0.0
          %v1027 = vadd.f32 %v1025, %v1026
          %v1028 = vsel %vm481, %v1021, 0.0
          %v1029 = vadd.f32 %v1027, %v1028
          %v1030 = vsel %vm481, %v1022, 0.0
          %v1031 = vadd.f32 %v1029, %v1030
          %v1032 = vsel %vm481, %v1023, 0.0
          %v1033 = vadd.f32 %v1031, %v1032
          %v1034 = vsel %vm481, %v1024, 0.0
          %v1035 = vadd.f32 %v1033, %v1034
          %1036 = vadd.xlane.f32.xlu0 %v1035
          %v1037 = vpop.xlane.xlu0 %1036
          %v1038 = vrot.slane %v1037, 4
          %v1039 = vadd.f32 %v1037, %v1038
          %v1040 = vrot.slane %v1039, 2
          %v1041 = vadd.f32 %v1039, %v1040
          %v1042 = vrot.slane %v1041, 1
          %v1043 = vadd.f32 %v1041, %v1042
          %s1044 = vtos %v1043
          %v1045 = vld [vmem:[#allocation3] sm:$0xff]
          %v1046 = vld [vmem:[#allocation3 + $0x8] sm:$0xff]
          %v1047 = vsub.f32 %v1045, %v320
          %v1048 = vsub.f32 %v1046, %v321
          %v1049 = vmul.f32 %v1047, %v1047
          %v1050 = vmul.f32 %v1048, %v1048
          %v1051 = vsel %vm481, %v1049, 0.0
          %v1052 = vsel %vm481, %v1050, 0.0
          %v1053 = vadd.f32 %v1051, %v1052
          %1054 = vadd.xlane.f32.xlu0 %v1053
          %v1055 = vpop.xlane.xlu0 %1054
          %v1056 = vrot.slane %v1055, 4
          %v1057 = vadd.f32 %v1055, %v1056
          %v1058 = vrot.slane %v1057, 2
          %v1059 = vadd.f32 %v1057, %v1058
          %v1060 = vrot.slane %v1059, 1
          %v1061 = vadd.f32 %v1059, %v1060
          %s1062 = vtos %v1061
          %v1063 = vld [vmem:[#allocation4] sm:$0xff]
          %v1064 = vld [vmem:[#allocation4 + $0x8] sm:$0xff]
          %v1065 = vsub.f32 %v1063, %v386
          %v1066 = vsub.f32 %v1064, %v387
          %v1067 = vmul.f32 %v1065, %v1065
          %v1068 = vmul.f32 %v1066, %v1066
          %v1069 = vsel %vm481, %v1067, 0.0
          %v1070 = vsel %vm481, %v1068, 0.0
          %v1071 = vadd.f32 %v1069, %v1070
          %1072 = vadd.xlane.f32.xlu0 %v1071
          %v1073 = vpop.xlane.xlu0 %1072
          %v1074 = vrot.slane %v1073, 4
          %v1075 = vadd.f32 %v1073, %v1074
          %v1076 = vrot.slane %v1075, 2
          %v1077 = vadd.f32 %v1075, %v1076
          %v1078 = vrot.slane %v1077, 1
          %v1079 = vadd.f32 %v1077, %v1078
          %s1080 = vtos %v1079
          %v1081 = vld [vmem:[#allocation5] sm:$0xff]
          %v1082 = vld [vmem:[#allocation5 + $0x8] sm:$0xff]
          %v1083 = vld [vmem:[#allocation5 + $0x10] sm:$0xff]
          %v1084 = vld [vmem:[#allocation5 + $0x18] sm:$0xff]
          %v1085 = vld [vmem:[#allocation5 + $0x20] sm:$0xff]
          %v1086 = vld [vmem:[#allocation5 + $0x28] sm:$0xff]
          %v1087 = vld [vmem:[#allocation6] sm:$0xff]
          %v1088 = vld [vmem:[#allocation6 + $0x8] sm:$0xff]
          %v1089 = vld [vmem:[#allocation6 + $0x10] sm:$0xff]
          %v1090 = vld [vmem:[#allocation6 + $0x18] sm:$0xff]
          %v1091 = vld [vmem:[#allocation6 + $0x20] sm:$0xff]
          %v1092 = vld [vmem:[#allocation6 + $0x28] sm:$0xff]
          %v1093 = vmul.f32 %v1081, %v1081
          %v1094 = vmul.f32 %v1082, %v1082
          %v1095 = vmul.f32 %v1083, %v1083
          %v1096 = vmul.f32 %v1084, %v1084
          %v1097 = vmul.f32 %v1085, %v1085
          %v1098 = vmul.f32 %v1086, %v1086
          %v1099 = vsub.f32 %v1087, %v1093
          %v1100 = vsub.f32 %v1088, %v1094
          %v1101 = vsub.f32 %v1089, %v1095
          %v1102 = vsub.f32 %v1090, %v1096
          %v1103 = vsub.f32 %v1091, %v1097
          %v1104 = vsub.f32 %v1092, %v1098
          %v1105 = vmul.f32 %v957, %v957
          %v1106 = vmul.f32 %v959, %v959
          %v1107 = vmul.f32 %v962, %v962
          %v1108 = vmul.f32 %v964, %v964
          %v1109 = vmul.f32 %v967, %v967
          %v1110 = vmul.f32 %v969, %v969
          %v1111 = vsub.f32 %v972, %v1105
          %v1112 = vsub.f32 %v974, %v1106
          %v1113 = vsub.f32 %v977, %v1107
          %v1114 = vsub.f32 %v979, %v1108
          %v1115 = vsub.f32 %v982, %v1109
          %v1116 = vsub.f32 %v984, %v1110
          %v1117 = vmul.f32 %v1081, %v957
          %v1118 = vmul.f32 %v1082, %v959
          %v1119 = vmul.f32 %v1083, %v962
          %v1120 = vmul.f32 %v1084, %v964
          %v1121 = vmul.f32 %v1085, %v967
          %v1122 = vmul.f32 %v1086, %v969
          %v1123 = vsub.f32 %v987, %v1117
          %v1124 = vsub.f32 %v989, %v1118
          %v1125 = vsub.f32 %v992, %v1119
          %v1126 = vsub.f32 %v994, %v1120
          %v1127 = vsub.f32 %v997, %v1121
          %v1128 = vsub.f32 %v999, %v1122
          %v1129 = vmul.f32 %v1081, 2.0
          %v1130 = vmul.f32 %v1082, 2.0
          %v1131 = vmul.f32 %v1083, 2.0
          %v1132 = vmul.f32 %v1084, 2.0
          %v1133 = vmul.f32 %v1085, 2.0
          %v1134 = vmul.f32 %v1086, 2.0
          %v1135 = vmul.f32 %v1129, %v957
          %v1136 = vmul.f32 %v1130, %v959
          %v1137 = vmul.f32 %v1131, %v962
          %v1138 = vmul.f32 %v1132, %v964
          %v1139 = vmul.f32 %v1133, %v967
          %v1140 = vmul.f32 %v1134, %v969
          %v1141 = vadd.f32 %v1135, 0.0001
          %v1142 = vadd.f32 %v1136, 0.0001
          %v1143 = vadd.f32 %v1137, 0.0001
          %v1144 = vadd.f32 %v1138, 0.0001
          %v1145 = vadd.f32 %v1139, 0.0001
          %v1146 = vadd.f32 %v1140, 0.0001
          %v1147 = vmul.f32 %v1123, 2.0
          %v1148 = vmul.f32 %v1124, 2.0
          %v1149 = vmul.f32 %v1125, 2.0
          %v1150 = vmul.f32 %v1126, 2.0
          %v1151 = vmul.f32 %v1127, 2.0
          %v1152 = vmul.f32 %v1128, 2.0
          %v1153 = vadd.f32 %v1147, 0.0009
          %v1154 = vadd.f32 %v1148, 0.0009
          %v1155 = vadd.f32 %v1149, 0.0009
          %v1156 = vadd.f32 %v1150, 0.0009
          %v1157 = vadd.f32 %v1151, 0.0009
          %v1158 = vadd.f32 %v1152, 0.0009
          %v1159 = vmul.f32 %v1141, %v1153
          %v1160 = vmul.f32 %v1142, %v1154
          %v1161 = vmul.f32 %v1143, %v1155
          %v1162 = vmul.f32 %v1144, %v1156
          %v1163 = vmul.f32 %v1145, %v1157
          %v1164 = vmul.f32 %v1146, %v1158
          %v1165 = vadd.f32 %v1093, %v1105
          %v1166 = vadd.f32 %v1094, %v1106
          %v1167 = vadd.f32 %v1095, %v1107
          %v1168 = vadd.f32 %v1096, %v1108
          %v1169 = vadd.f32 %v1097, %v1109
          %v1170 = vadd.f32 %v1098, %v1110
          %v1171 = vadd.f32 %v1165, 0.0001
          %v1172 = vadd.f32 %v1166, 0.0001
          %v1173 = vadd.f32 %v1167, 0.0001
          %v1174 = vadd.f32 %v1168, 0.0001
          %v1175 = vadd.f32 %v1169, 0.0001
          %v1176 = vadd.f32 %v1170, 0.0001
          %v1177 = vadd.f32 %v1099, %v1111
          %v1178 = vadd.f32 %v1100, %v1112
          %v1179 = vadd.f32 %v1101, %v1113
          %v1180 = vadd.f32 %v1102, %v1114
          %v1181 = vadd.f32 %v1103, %v1115
          %v1182 = vadd.f32 %v1104, %v1116
          %v1183 = vadd.f32 %v1177, 0.0009
          %v1184 = vadd.f32 %v1178, 0.0009
          %v1185 = vadd.f32 %v1179, 0.0009
          %v1186 = vadd.f32 %v1180, 0.0009
          %v1187 = vadd.f32 %v1181, 0.0009
          %v1188 = vadd.f32 %v1182, 0.0009
          %v1189 = vmul.f32 %v1171, %v1183
          %v1190 = vmul.f32 %v1172, %v1184
          %v1191 = vmul.f32 %v1173, %v1185
          %v1192 = vmul.f32 %v1174, %v1186
          %v1193 = vmul.f32 %v1175, %v1187
          %v1194 = vmul.f32 %v1176, %v1188
          %v1195 = vrcp.pop %v1189
          %v1196 = vrcp.pop %v1190
          %v1197 = vrcp.pop %v1191
          %v1198 = vrcp.pop %v1192
          %v1199 = vrcp.pop %v1193
          %v1200 = vrcp.pop %v1194
          %v1201 = vmul.f32 %v1159, %v1195
          %v1202 = vmul.f32 %v1160, %v1196
          %v1203 = vmul.f32 %v1161, %v1197
          %v1204 = vmul.f32 %v1162, %v1198
          %v1205 = vmul.f32 %v1163, %v1199
          %v1206 = vmul.f32 %v1164, %v1200
          %v1207 = vsel %vm481, %v1201, 0.0
          %v1208 = vsel %vm481, %v1202, 0.0
          %v1209 = vadd.f32 %v1207, %v1208
          %v1210 = vsel %vm481, %v1203, 0.0
          %v1211 = vadd.f32 %v1209, %v1210
          %v1212 = vsel %vm481, %v1204, 0.0
          %v1213 = vadd.f32 %v1211, %v1212
          %v1214 = vsel %vm481, %v1205, 0.0
          %v1215 = vadd.f32 %v1213, %v1214
          %v1216 = vsel %vm481, %v1206, 0.0
          %v1217 = vadd.f32 %v1215, %v1216
          %1218 = vadd.xlane.f32.xlu0 %v1217
          %v1219 = vpop.xlane.xlu0 %1218
          %v1220 = vrot.slane %v1219, 4
          %v1221 = vadd.f32 %v1219, %v1220
          %v1222 = vrot.slane %v1221, 2
          %v1223 = vadd.f32 %v1221, %v1222
          %v1224 = vrot.slane %v1223, 1
          %v1225 = vadd.f32 %v1223, %v1224
          %s1226 = vtos %v1225
          %vm1227 = vcmp.eq.s32.totalorder %v1002, 0
          %v1228 = vstv %s1044
          %v1229 = vsel %vm1227, %v1228, 0.0
          %vm1230 = vcmp.eq.s32.totalorder %v1002, 1
          %v1231 = vstv %s1062
          %v1232 = vsel %vm1230, %v1231, 0.0
          %v1233 = vadd.f32 %v1229, %v1232
          %vm1234 = vcmp.eq.s32.totalorder %v1002, 2
          %v1235 = vstv %s1080
          %v1236 = vsel %vm1234, %v1235, 0.0
          %v1237 = vadd.f32 %v1233, %v1236
          %vm1238 = vcmp.eq.s32.totalorder %v1002, 3
          %v1239 = vstv %s1226
          %v1240 = vsel %vm1238, %v1239, 0.0
          %v1241 = vadd.f32 %v1237, %v1240
          %v1242 = vld [vmem:[%s312] sm:$0xff]
          %v1243 = vadd.f32 %v1242, %v1241
          %1244 = vst [vmem:[%s312] sm:$0xff] %v1243
        $region60: #{tpu_custom_call.1} parent=35 // pred_fallthru
          _
        %p1245 = scmp.eq.s32.totalorder %s30, 2
        // Predicated region
        $region61: #{tpu_custom_call.1} parent=35 // pred_check
          %p1246 = pneg %p1245
        $region62: #{tpu_custom_call.1} parent=35 // pred_check_branch
          %1248 = sbr.rel (%p1246) target = $region64
        $region63: #{tpu_custom_call.1} parent=35 // pred_region
          %1251 = vrot.lane.b32.xlu0 %v320, 1
          %v1252 = vpop.permute.xlu0 %1251
          %1253 = vrot.lane.b32.xlu0 %v321, 1
          %v1254 = vpop.permute.xlu0 %1253
          %v1257 = vsub.f32 %v320, %v1252
          %v1258 = vsub.f32 %v321, %v1254
          %v1259 = vand.u32 2147483647, %v1257
          %v1260 = vand.u32 2147483647, %v1258
          %1263 = vrot.lane.b32.xlu0 %v1259, 127
          %v1264 = vpop.permute.xlu0 %1263
          %1265 = vrot.lane.b32.xlu0 %v1260, 127
          %v1266 = vpop.permute.xlu0 %1265
          %vm1269 = vcmask 121856
          %v1270 = vsel %vm1269, %v1264, 0.0
          %v1271 = vsel %vm1269, %v1266, 0.0
          %v1272 = vadd.f32 %v1270, %v1271
          %1273 = vadd.xlane.f32.xlu0 %v1272
          %v1274 = vpop.xlane.xlu0 %1273
          %v1275 = vrot.slane %v1274, 4
          %v1276 = vadd.f32 %v1274, %v1275
          %v1277 = vrot.slane %v1276, 2
          %v1278 = vadd.f32 %v1276, %v1277
          %v1279 = vrot.slane %v1278, 1
          %v1280 = vadd.f32 %v1278, %v1279
          %s1281 = vtos %v1280
          %vm1282 = vcmask 1040384
          %v1283 = vrot.slane %v320, 7
          %v1284 = vrot.slane %v321, 7
          %v1285 = vsel %vm1282, %v1283, %v1284
          %v1288 = vsub.f32 %v320, %v1283
          %v1289 = vsub.f32 %v321, %v1285
          %v1290 = vand.u32 2147483647, %v1288
          %v1291 = vand.u32 2147483647, %v1289
          %vm1294 = vcmask 1046528
          %v1295 = vrot.slane %v1290, 1
          %v1296 = vrot.slane %v1291, 1
          %v1297 = vsel %vm1294, %v1295, %v1296
          %v1300 = vsel %vm481, %v1297, 0.0
          %vm1301 = vcmask 129024
          %v1302 = vsel %vm1301, %v1296, 0.0
          %v1303 = vadd.f32 %v1300, %v1302
          %1304 = vadd.xlane.f32.xlu0 %v1303
          %v1305 = vpop.xlane.xlu0 %1304
          %v1306 = vrot.slane %v1305, 4
          %v1307 = vadd.f32 %v1305, %v1306
          %v1308 = vrot.slane %v1307, 2
          %v1309 = vadd.f32 %v1307, %v1308
          %v1310 = vrot.slane %v1309, 1
          %v1311 = vadd.f32 %v1309, %v1310
          %s1312 = vtos %v1311
          %vm1313 = vcmp.eq.s32.totalorder %v1002, 4
          %v1314 = vstv %s1281
          %v1315 = vsel %vm1313, %v1314, 0.0
          %vm1316 = vcmp.eq.s32.totalorder %v1002, 5
          %v1317 = vstv %s1312
          %v1318 = vsel %vm1316, %v1317, 0.0
          %v1319 = vadd.f32 %v1315, %v1318
          %v1320 = vld [vmem:[%s312] sm:$0xff]
          %v1321 = vadd.f32 %v1320, %v1319
          %1322 = vst [vmem:[%s312] sm:$0xff] %v1321
        $region64: #{tpu_custom_call.1} parent=35 // pred_fallthru
          _
        %p1323 = scmp.lt.s32.totalorder %s30, 2
        // Predicated region
        $region65: #{tpu_custom_call.1} parent=35 // pred_check
          %p1324 = pneg %p1323
        $region66: #{tpu_custom_call.1} parent=35 // pred_check_branch
          %1326 = sbr.rel (%p1324) target = $region68
        $region67: #{tpu_custom_call.1} parent=35 // pred_region
          %1327 = vst.msk [vmem:[#allocation2] sm:$0xff] %vm481, %v314
          %1328 = vst.msk [vmem:[#allocation2 + $0x8] sm:$0xff] %vm481, %v315
          %1329 = vst.msk [vmem:[#allocation2 + $0x10] sm:$0xff] %vm481, %v316
          %1330 = vst.msk [vmem:[#allocation2 + $0x18] sm:$0xff] %vm481, %v317
          %1331 = vst.msk [vmem:[#allocation2 + $0x20] sm:$0xff] %vm481, %v318
          %1332 = vst.msk [vmem:[#allocation2 + $0x28] sm:$0xff] %vm481, %v319
          %1333 = vst.msk [vmem:[#allocation3] sm:$0xff] %vm481, %v320
          %1334 = vst.msk [vmem:[#allocation3 + $0x8] sm:$0xff] %vm481, %v321
          %1335 = vst.msk [vmem:[#allocation4] sm:$0xff] %vm481, %v386
          %1336 = vst.msk [vmem:[#allocation4 + $0x8] sm:$0xff] %vm481, %v387
          %1337 = vst.msk [vmem:[#allocation5] sm:$0xff] %vm481, %v957
          %1338 = vst.msk [vmem:[#allocation5 + $0x8] sm:$0xff] %vm481, %v959
          %1339 = vst.msk [vmem:[#allocation5 + $0x10] sm:$0xff] %vm481, %v962
          %1340 = vst.msk [vmem:[#allocation5 + $0x18] sm:$0xff] %vm481, %v964
          %1341 = vst.msk [vmem:[#allocation5 + $0x20] sm:$0xff] %vm481, %v967
          %1342 = vst.msk [vmem:[#allocation5 + $0x28] sm:$0xff] %vm481, %v969
          %1343 = vst.msk [vmem:[#allocation6] sm:$0xff] %vm481, %v972
          %1344 = vst.msk [vmem:[#allocation6 + $0x8] sm:$0xff] %vm481, %v974
          %1345 = vst.msk [vmem:[#allocation6 + $0x10] sm:$0xff] %vm481, %v977
          %1346 = vst.msk [vmem:[#allocation6 + $0x18] sm:$0xff] %vm481, %v979
          %1347 = vst.msk [vmem:[#allocation6 + $0x20] sm:$0xff] %vm481, %v982
          %1348 = vst.msk [vmem:[#allocation6 + $0x28] sm:$0xff] %vm481, %v984
        $region68: #{tpu_custom_call.1} parent=35 // pred_fallthru
          _
        %s1349 = sand.u32 %s143, 1
        %s1350 = scalar_lea.sflag [#allocation9], %s1349
        %s1351 = sand.u32 %s143, 1
        %s1352 = smul.addr %s1351, 8
        %s1353 = scalar_lea.vmem [#allocation15], %s1352
        // Predicated region
        $region69: #{tpu_custom_call.1} parent=35 // pred_check
          %p1354 = pneg %p153
        $region70: #{tpu_custom_call.1} parent=35 // pred_check_branch
          %1356 = sbr.rel (%p1354) target = $region72
        $region71: #{tpu_custom_call.1} parent=35 // pred_region
          %1358 = vsyncadd %s1350, 0
          %s1359 = smul.addr %s29, 8
          %s1360 = scalar_lea.hbm %s4, %s1359
          %s1362 = sshll.u32 %s1353, 4
          %s1363 = int_to_ptr.vmem [resolvable:$true] %s1362
          %s1364 = sshll.u32 %s1360, 4
          %s1365 = int_to_ptr.hbm [resolvable:$true] %s1364
          %1367 = dma.vmem_to_hbm [thread:$0]  %s1363, 128, %s1365, %s1350
        $region72: #{tpu_custom_call.1} parent=35 // pred_fallthru
          _
      $region36: #{tpu_custom_call.1} parent=5 // pred_fallthru
        _
      %p1368 = scmp.le.s32.totalorder 2, %s20
      // Predicated region
      $region73: #{tpu_custom_call.1} parent=5 // pred_check
        %p1369 = pneg %p1368
      $region74: #{tpu_custom_call.1} parent=5 // pred_check_branch
        %1371 = sbr.rel (%p1369) target = $region76
      $region75: #{tpu_custom_call.1} parent=5 // pred_region
        %s1372 = ssub.s32 %s20, 2
        // Predicated region
        $region77: #{tpu_custom_call.1} parent=75 // pred_check
          %p1373 = pneg %p159
        $region78: #{tpu_custom_call.1} parent=75 // pred_check_branch
          %1375 = sbr.rel (%p1373) target = $region80
        $region79: #{tpu_custom_call.1} parent=75 // pred_region
          %s1376 = sand.u32 %s144, 1
          %s1377 = scalar_lea.sflag [#allocation9], %s1376
          %s1378 = sand.u32 %s144, 1
          %s1379 = smul.addr %s1378, 8
          %s1380 = scalar_lea.vmem [#allocation15], %s1379
          %1382 = dma.done %s1377, 128
        $region80: #{tpu_custom_call.1} parent=75 // pred_fallthru
          _
      $region76: #{tpu_custom_call.1} parent=5 // pred_fallthru
        _
    $region6: #{tpu_custom_call.1} parent=1 // loop_footer
      %s24 = sadd.s32 1, %s20
    $region7: #{tpu_custom_call.1} parent=1 // loop_footer_branch
      %19 = sbr.rel target = $region3
    $region8: #{tpu_custom_call.1} parent=1 // loop_exit
      _
    %1383 = vsyncpa [#allocation8], 1
    %s1384 = scalar_lea.sflag [#allocation8], 1
    %1385 = vsyncpa %s1384, 1
    %1386 = vsyncpa [#allocation11], 1
    %s1387 = scalar_lea.sflag [#allocation11], 1
    %1388 = vsyncpa %s1387, 1
    %1389 = vsyncpa [#allocation14], 1
    %1390 = vsyncpa [#allocation9], 1
    %s1391 = scalar_lea.sflag [#allocation9], 1
    %1392 = vsyncpa %s1391, 1

</llo_original>
